<compile_context>
chip_gen: v7x
topology: tpu7x:2x2x1
jax: 0.10.0
libtpu: 0.0.40
codegen_flags: <defaults>
</compile_context>

<pallas_src>
import jax
import jax.numpy as jnp
import numpy as np
from jax.experimental import pallas as pl
from jax.experimental.pallas import tpu as pltpu

EPS = 1e-5  # nn.InstanceNorm2d default eps


def _make_kernel(C, H, W, mxu_dtype):
    HW = H * W
    inv_hw = 1.0 / HW

    def kernel(x_ref, w1_ref, w2_ref, o_ref):
        # x_ref / o_ref : (1, C, HW) lane-dense VMEM blocks (one image per grid step)
        # w*_ref        : (9, C, C) VMEM weight stacks, tap-major (di*3 + dj)
        x = x_ref[0].astype(jnp.float32)                 # (C, HW), kept for residual

        # Reflect-padding boundary masks: iota + modulo at (1, HW) (cheap), then a
        # plain int32 sublane broadcast before the compares.
        pos1 = jax.lax.broadcasted_iota(jnp.int32, (1, HW), 1)
        col1 = pos1 % W
        pos = jnp.broadcast_to(pos1, (C, HW))
        col = jnp.broadcast_to(col1, (C, HW))
        col_first = col == 0                  # j == 0
        col_last = col == (W - 1)             # j == W-1
        row_first = pos < W                   # i == 0
        row_last = pos >= (H - 1) * W         # i == H-1

        def conv_block(v, w_ref, use_act):
            # 3x3 reflect conv (bias dropped; cancelled by InstanceNorm) as 9
            # fp32-accumulated MXU matmuls, then InstanceNorm2d(affine=False),
            # then optional ReLU.  v: (C, HW) fp32.
            vb = v.astype(mxu_dtype)
            acc = None
            for dx in (-1, 0, 1):
                # Column-shifted plane: element (i, j) holds v[i, reflect(j + dx)].
                if dx == 0:
                    h = vb
                else:
                    # jnp.roll kept (static lane slices + concat, known-good);
                    # pltpu.roll(v, k, axis=1) is a drop-in that uses the XLU slot.
                    left = jnp.roll(vb, 1, axis=1)       # reads column j-1
                    right = jnp.roll(vb, -1, axis=1)     # reads column j+1
                    if dx == -1:
                        h = jnp.where(col_first, right, left)   # reflect at j=0
                    else:
                        h = jnp.where(col_last, left, right)    # reflect at j=W-1
                up = jnp.roll(h, W, axis=1)              # reads row i-1
                down = jnp.roll(h, -W, axis=1)           # reads row i+1
                for dy in (-1, 0, 1):
                    if dy == -1:
                        view = jnp.where(row_first, down, up)   # reflect at i=0
                    elif dy == 0:
                        view = h
                    else:
                        view = jnp.where(row_last, up, down)    # reflect at i=H-1
                    tap = (dy + 1) * 3 + (dx + 1)
                    part = jnp.dot(w_ref[tap], view,
                                   preferred_element_type=jnp.float32)  # (C, HW) f32
                    acc = part if acc is None else acc + part
            # InstanceNorm2d(affine=False): per-channel mean / biased variance.
            mean = jnp.sum(acc, axis=1, keepdims=True) * inv_hw
            d = acc - mean
            var = jnp.sum(d * d, axis=1, keepdims=True) * inv_hw
            y = d * jax.lax.rsqrt(var + EPS)
            if use_act:
                y = jnp.maximum(y, 0.0)
            return y

        y = conv_block(x, w1_ref, True)     # ConvBlock(use_act=True)
        y = conv_block(y, w2_ref, False)    # ConvBlock(use_act=False)
        o_ref[0] = (x + y).astype(o_ref.dtype)

    return kernel


def residual_block(x, w1, b1, w2, b2, *, mxu_dtype=jnp.bfloat16):
    """x: (N, C, H, W); w*: (C, C, 3, 3) OIHW; b*: (C,).  Returns (N, C, H, W).

    b1/b2 are accepted for interface parity with nn.Conv2d but are unused: a
    per-channel conv bias is algebraically cancelled by InstanceNorm2d(affine=False).
    """
    del b1, b2
    N, C, H, W = x.shape
    assert H >= 2 and W >= 2, "reflect padding needs H >= 2 and W >= 2"
    HW = H * W

    # Pad channels to a multiple of 8 (sublane alignment). Padded channels are zero
    # and remain exactly zero through conv / instance-norm / relu; sliced away below.
    Cp = max(8, ((C + 7) // 8) * 8)
    pc = Cp - C
    if pc:
        x_k = jnp.pad(x, ((0, 0), (0, pc), (0, 0), (0, 0)))
        w1_k = jnp.pad(w1, ((0, pc), (0, pc), (0, 0), (0, 0)))
        w2_k = jnp.pad(w2, ((0, pc), (0, pc), (0, 0), (0, 0)))
    else:
        x_k, w1_k, w2_k = x, w1, w2

    def to_taps(w):
        # OIHW -> (9, C_out, C_in), tap-major (di*3 + dj), matching the kernel loop.
        return jnp.transpose(w, (2, 3, 0, 1)).reshape(9, Cp, Cp).astype(mxu_dtype)

    w1t, w2t = to_taps(w1_k), to_taps(w2_k)
    x_flat = x_k.reshape(N, Cp, HW)          # lane-dense (C, HW) layout for the kernel

    w_itemsize = jnp.dtype(mxu_dtype).itemsize
    cost = pl.CostEstimate(
        flops=int(N * (2 * 2 * 9 * Cp * Cp * HW + 2 * 10 * Cp * HW)),
        transcendentals=int(2 * N * Cp),
        bytes_accessed=int(2 * N * Cp * HW * x.dtype.itemsize
                           + 2 * 9 * Cp * Cp * w_itemsize),
    )

    # Explicit VMEM budget (raises the 16/32 MiB scoped defaults when needed, capped
    # at v7x's 64 MiB physical).  Slab-free design: double-buffered image blocks +
    # resident weights + live in-kernel intermediates only.
    est = (4 * Cp * HW * x.dtype.itemsize          # x/out blocks, double-buffered
           + 4 * 9 * Cp * Cp * w_itemsize          # w1, w2, double-buffered
           + 10 * Cp * HW * 4)                     # live in-kernel fp32 intermediates
    vmem_limit = int(min(max(2 * est, 32 * 1024 * 1024), 64 * 1024 * 1024))

    # TODO(synk): for N=1 on v7x, a second "parallel" axis over output-channel tiles
    # would keep both TensorCores busy, but the fused second conv consumes all
    # channels of the first, so it needs recompute or a cross-core exchange.
    out_flat = pl.pallas_call(
        _make_kernel(Cp, H, W, mxu_dtype),
        out_shape=jax.ShapeDtypeStruct((N, Cp, HW), x.dtype),
        grid=(N,),
        in_specs=[
            pl.BlockSpec((1, Cp, HW), lambda n: (n, 0, 0)),   # x, one image / step
            pl.BlockSpec((9, Cp, Cp), lambda n: (0, 0, 0)),   # conv1 taps (resident)
            pl.BlockSpec((9, Cp, Cp), lambda n: (0, 0, 0)),   # conv2 taps (resident)
        ],
        out_specs=pl.BlockSpec((1, Cp, HW), lambda n: (n, 0, 0)),
        compiler_params=pltpu.CompilerParams(
            dimension_semantics=("parallel",),                # batch across TCs
            vmem_limit_bytes=vmem_limit),
        cost_estimate=cost,
    )(x_flat, w1t, w2t)

    out = out_flat.reshape(N, Cp, H, W)
    return out[:, :C] if pc else out


def _reference(x, w1, b1, w2, b2):
    # pure-JAX reference matching the PyTorch module (bias included here; it is
    # cancelled by the instance norm, which the kernel exploits).
    def conv(v, w, b):
        p = jnp.pad(v, ((0, 0), (0, 0), (1, 1), (1, 1)), mode="reflect")
        y = jax.lax.conv_general_dilated(
            p, w, window_strides=(1, 1), padding="VALID",
            dimension_numbers=("NCHW", "OIHW", "NCHW"))
        return y + b[None, :, None, None]

    def inorm(v):
        mean = jnp.mean(v, axis=(2, 3), keepdims=True)
        var = jnp.mean((v - mean) ** 2, axis=(2, 3), keepdims=True)
        return (v - mean) * jax.lax.rsqrt(var + EPS)

    y = jnp.maximum(inorm(conv(x, w1, b1)), 0.0)
    y = inorm(conv(y, w2, b2))
    return x + y


if __name__ == "__main__":
    N, C, H, W = 2, 4, 16, 16
    key = jax.random.PRNGKey(0)
    kx, k1, kb1, k2, kb2 = jax.random.split(key, 5)

    x = jax.random.normal(kx, (N, C, H, W), jnp.float32)
    # synthetic parameters with nn.Conv2d(C, C, 3, padding=1) shapes
    w1 = jax.random.normal(k1, (C, C, 3, 3), jnp.float32) * 0.1
    b1 = jax.random.normal(kb1, (C,), jnp.float32) * 0.1
    w2 = jax.random.normal(k2, (C, C, 3, 3), jnp.float32) * 0.1
    b2 = jax.random.normal(kb2, (C,), jnp.float32) * 0.1

    ref = _reference(x, w1, b1, w2, b2)

    # fp32 MXU operands: tight structural-correctness check.
    out_f32 = residual_block(x, w1, b1, w2, b2, mxu_dtype=jnp.float32)
    jax.block_until_ready(out_f32)
    np.testing.assert_allclose(np.asarray(out_f32), np.asarray(ref),
                               rtol=2e-3, atol=2e-3)

    # bf16 MXU operands (default fast path on v5e/v6e/v7x): fp32 accumulation kept,
    # conv inputs/weights quantized to bf16 -> looser tolerance vs the fp32 reference.
    out_bf16 = residual_block(x, w1, b1, w2, b2)
    jax.block_until_ready(out_bf16)
    np.testing.assert_allclose(np.asarray(out_bf16), np.asarray(ref),
                               rtol=5e-2, atol=5e-2)

    print("KERNEL_OK")
</pallas_src>

<mosaic_0001>
module attributes {stable_mosaic.version = 11 : i64} {
  func.func @kernel(%arg0: i32, %arg1: memref<1x8x256xf32, #tpu.memory_space<vmem>>, %arg2: memref<9x8x8xf32, #tpu.memory_space<vmem>>, %arg3: memref<9x8x8xf32, #tpu.memory_space<vmem>>, %arg4: memref<1x8x256xf32, #tpu.memory_space<vmem>>) attributes {dimension_semantics = [#tpu.dimension_semantics<parallel>], iteration_bounds = array<i64: 2>, scalar_prefetch = 0 : i64, scratch_operands = 0 : i64, tpu.core_type = #tpu.core_type<tc>, window_params = [{transform_indices = @transform_0, window_bounds = array<i64: 1, 8, 256>}, {pipeline_mode = #tpu.pipeline_mode<synchronous>, transform_indices = @transform_1, window_bounds = array<i64: 9, 8, 8>}, {pipeline_mode = #tpu.pipeline_mode<synchronous>, transform_indices = @transform_2, window_bounds = array<i64: 9, 8, 8>}, {transform_indices = @transform_3, window_bounds = array<i64: 1, 8, 256>}]} {
    %c0 = arith.constant 0 : index
    %c0_0 = arith.constant 0 : index
    %c0_1 = arith.constant 0 : index
    %0 = vector.load %arg1[%c0, %c0_0, %c0_1] : memref<1x8x256xf32, #tpu.memory_space<vmem>>, vector<1x8x256xf32>
    %1 = vector.shape_cast %0 : vector<1x8x256xf32> to vector<8x256xf32>
    %2 = tpu.iota {dimensions = array<i32: 1>} : vector<1x256xi32>
    %c16_i32 = arith.constant 16 : i32
    %c0_i32 = arith.constant 0 : i32
    %3 = arith.cmpi eq, %c16_i32, %c0_i32 : i32
    %c1_i32 = arith.constant 1 : i32
    %4 = arith.select %3, %c1_i32, %c16_i32 : i32
    %5 = vector.broadcast %4 : i32 to vector<1x256xi32>
    %6 = arith.remsi %2, %5 : vector<1x256xi32>
    %c0_i32_2 = arith.constant 0 : i32
    %7 = vector.broadcast %c0_i32_2 : i32 to vector<1x256xi32>
    %8 = arith.cmpi ne, %6, %7 : vector<1x256xi32>
    %c0_i32_3 = arith.constant 0 : i32
    %9 = vector.broadcast %c0_i32_3 : i32 to vector<1x256xi32>
    %10 = arith.cmpi slt, %6, %9 : vector<1x256xi32>
    %c0_i32_4 = arith.constant 0 : i32
    %11 = arith.cmpi slt, %4, %c0_i32_4 : i32
    %12 = vector.broadcast %11 : i1 to vector<1x256xi1>
    %13 = vector.broadcast %12 : vector<1x256xi1> to vector<1x256xi1>
    %14 = arith.xori %10, %13 : vector<1x256xi1>
    %15 = arith.andi %14, %8 : vector<1x256xi1>
    %16 = vector.broadcast %4 : i32 to vector<1x256xi32>
    %17 = arith.addi %6, %16 : vector<1x256xi32>
    %18 = arith.select %15, %17, %6 : vector<1x256xi1>, vector<1x256xi32>
    %19 = vector.shape_cast %2 : vector<1x256xi32> to vector<1x256xi32>
    %20 = vector.broadcast %19 : vector<1x256xi32> to vector<8x256xi32>
    %21 = vector.shape_cast %18 : vector<1x256xi32> to vector<1x256xi32>
    %22 = vector.broadcast %21 : vector<1x256xi32> to vector<8x256xi32>
    %c0_i32_5 = arith.constant 0 : i32
    %23 = vector.broadcast %c0_i32_5 : i32 to vector<8x256xi32>
    %24 = arith.cmpi eq, %22, %23 : vector<8x256xi32>
    %c15_i32 = arith.constant 15 : i32
    %25 = vector.broadcast %c15_i32 : i32 to vector<8x256xi32>
    %26 = arith.cmpi eq, %22, %25 : vector<8x256xi32>
    %c16_i32_6 = arith.constant 16 : i32
    %27 = vector.broadcast %c16_i32_6 : i32 to vector<8x256xi32>
    %28 = arith.cmpi slt, %20, %27 : vector<8x256xi32>
    %c240_i32 = arith.constant 240 : i32
    %29 = vector.broadcast %c240_i32 : i32 to vector<8x256xi32>
    %30 = arith.cmpi sge, %20, %29 : vector<8x256xi32>
    %31 = vector.extract_strided_slice %1 {offsets = [0, 255], sizes = [8, 1], strides = [1, 1]} : vector<8x256xf32> to vector<8x1xf32>
    %32 = vector.extract_strided_slice %1 {offsets = [0, 0], sizes = [8, 255], strides = [1, 1]} : vector<8x256xf32> to vector<8x255xf32>
    %33 = tpu.concatenate %31, %32 in 1 : vector<8x1xf32>, vector<8x255xf32> -> vector<8x256xf32>
    %34 = vector.extract_strided_slice %1 {offsets = [0, 1], sizes = [8, 255], strides = [1, 1]} : vector<8x256xf32> to vector<8x255xf32>
    %35 = vector.extract_strided_slice %1 {offsets = [0, 0], sizes = [8, 1], strides = [1, 1]} : vector<8x256xf32> to vector<8x1xf32>
    %36 = tpu.concatenate %34, %35 in 1 : vector<8x255xf32>, vector<8x1xf32> -> vector<8x256xf32>
    %37 = arith.select %24, %36, %33 : vector<8x256xi1>, vector<8x256xf32>
    %38 = vector.extract_strided_slice %37 {offsets = [0, 240], sizes = [8, 16], strides = [1, 1]} : vector<8x256xf32> to vector<8x16xf32>
    %39 = vector.extract_strided_slice %37 {offsets = [0, 0], sizes = [8, 240], strides = [1, 1]} : vector<8x256xf32> to vector<8x240xf32>
    %40 = tpu.concatenate %38, %39 in 1 : vector<8x16xf32>, vector<8x240xf32> -> vector<8x256xf32>
    %41 = vector.extract_strided_slice %37 {offsets = [0, 16], sizes = [8, 240], strides = [1, 1]} : vector<8x256xf32> to vector<8x240xf32>
    %42 = vector.extract_strided_slice %37 {offsets = [0, 0], sizes = [8, 16], strides = [1, 1]} : vector<8x256xf32> to vector<8x16xf32>
    %43 = tpu.concatenate %41, %42 in 1 : vector<8x240xf32>, vector<8x16xf32> -> vector<8x256xf32>
    %44 = arith.select %28, %43, %40 : vector<8x256xi1>, vector<8x256xf32>
    %c0_7 = arith.constant 0 : index
    %c0_8 = arith.constant 0 : index
    %c0_9 = arith.constant 0 : index
    %45 = vector.load %arg2[%c0_7, %c0_8, %c0_9] : memref<9x8x8xf32, #tpu.memory_space<vmem>>, vector<1x8x8xf32>
    %46 = vector.shape_cast %45 : vector<1x8x8xf32> to vector<8x8xf32>
    %cst = arith.constant dense<0.000000e+00> : vector<8x256xf32>
    %47 = tpu.matmul %46, %44, %cst {dimension_numbers = #tpu.dot_dimension_numbers<[1], [0], [0], [1], [0, 0, 1, 1], [], []>} : vector<8x8xf32>, vector<8x256xf32>, vector<8x256xf32> -> vector<8x256xf32>
    %c3 = arith.constant 3 : index
    %c0_10 = arith.constant 0 : index
    %c0_11 = arith.constant 0 : index
    %48 = vector.load %arg2[%c3, %c0_10, %c0_11] : memref<9x8x8xf32, #tpu.memory_space<vmem>>, vector<1x8x8xf32>
    %49 = vector.shape_cast %48 : vector<1x8x8xf32> to vector<8x8xf32>
    %cst_12 = arith.constant dense<0.000000e+00> : vector<8x256xf32>
    %50 = tpu.matmul %49, %37, %cst_12 {dimension_numbers = #tpu.dot_dimension_numbers<[1], [0], [0], [1], [0, 0, 1, 1], [], []>} : vector<8x8xf32>, vector<8x256xf32>, vector<8x256xf32> -> vector<8x256xf32>
    %51 = arith.addf %47, %50 : vector<8x256xf32>
    %52 = arith.select %30, %40, %43 : vector<8x256xi1>, vector<8x256xf32>
    %c6 = arith.constant 6 : index
    %c0_13 = arith.constant 0 : index
    %c0_14 = arith.constant 0 : index
    %53 = vector.load %arg2[%c6, %c0_13, %c0_14] : memref<9x8x8xf32, #tpu.memory_space<vmem>>, vector<1x8x8xf32>
    %54 = vector.shape_cast %53 : vector<1x8x8xf32> to vector<8x8xf32>
    %cst_15 = arith.constant dense<0.000000e+00> : vector<8x256xf32>
    %55 = tpu.matmul %54, %52, %cst_15 {dimension_numbers = #tpu.dot_dimension_numbers<[1], [0], [0], [1], [0, 0, 1, 1], [], []>} : vector<8x8xf32>, vector<8x256xf32>, vector<8x256xf32> -> vector<8x256xf32>
    %56 = arith.addf %51, %55 : vector<8x256xf32>
    %57 = vector.extract_strided_slice %1 {offsets = [0, 240], sizes = [8, 16], strides = [1, 1]} : vector<8x256xf32> to vector<8x16xf32>
    %58 = vector.extract_strided_slice %1 {offsets = [0, 0], sizes = [8, 240], strides = [1, 1]} : vector<8x256xf32> to vector<8x240xf32>
    %59 = tpu.concatenate %57, %58 in 1 : vector<8x16xf32>, vector<8x240xf32> -> vector<8x256xf32>
    %60 = vector.extract_strided_slice %1 {offsets = [0, 16], sizes = [8, 240], strides = [1, 1]} : vector<8x256xf32> to vector<8x240xf32>
    %61 = vector.extract_strided_slice %1 {offsets = [0, 0], sizes = [8, 16], strides = [1, 1]} : vector<8x256xf32> to vector<8x16xf32>
    %62 = tpu.concatenate %60, %61 in 1 : vector<8x240xf32>, vector<8x16xf32> -> vector<8x256xf32>
    %63 = arith.select %28, %62, %59 : vector<8x256xi1>, vector<8x256xf32>
    %c1 = arith.constant 1 : index
    %c0_16 = arith.constant 0 : index
    %c0_17 = arith.constant 0 : index
    %64 = vector.load %arg2[%c1, %c0_16, %c0_17] : memref<9x8x8xf32, #tpu.memory_space<vmem>>, vector<1x8x8xf32>
    %65 = vector.shape_cast %64 : vector<1x8x8xf32> to vector<8x8xf32>
    %cst_18 = arith.constant dense<0.000000e+00> : vector<8x256xf32>
    %66 = tpu.matmul %65, %63, %cst_18 {dimension_numbers = #tpu.dot_dimension_numbers<[1], [0], [0], [1], [0, 0, 1, 1], [], []>} : vector<8x8xf32>, vector<8x256xf32>, vector<8x256xf32> -> vector<8x256xf32>
    %67 = arith.addf %56, %66 : vector<8x256xf32>
    %c4 = arith.constant 4 : index
    %c0_19 = arith.constant 0 : index
    %c0_20 = arith.constant 0 : index
    %68 = vector.load %arg2[%c4, %c0_19, %c0_20] : memref<9x8x8xf32, #tpu.memory_space<vmem>>, vector<1x8x8xf32>
    %69 = vector.shape_cast %68 : vector<1x8x8xf32> to vector<8x8xf32>
    %cst_21 = arith.constant dense<0.000000e+00> : vector<8x256xf32>
    %70 = tpu.matmul %69, %1, %cst_21 {dimension_numbers = #tpu.dot_dimension_numbers<[1], [0], [0], [1], [0, 0, 1, 1], [], []>} : vector<8x8xf32>, vector<8x256xf32>, vector<8x256xf32> -> vector<8x256xf32>
    %71 = arith.addf %67, %70 : vector<8x256xf32>
    %72 = arith.select %30, %59, %62 : vector<8x256xi1>, vector<8x256xf32>
    %c7 = arith.constant 7 : index
    %c0_22 = arith.constant 0 : index
    %c0_23 = arith.constant 0 : index
    %73 = vector.load %arg2[%c7, %c0_22, %c0_23] : memref<9x8x8xf32, #tpu.memory_space<vmem>>, vector<1x8x8xf32>
    %74 = vector.shape_cast %73 : vector<1x8x8xf32> to vector<8x8xf32>
    %cst_24 = arith.constant dense<0.000000e+00> : vector<8x256xf32>
    %75 = tpu.matmul %74, %72, %cst_24 {dimension_numbers = #tpu.dot_dimension_numbers<[1], [0], [0], [1], [0, 0, 1, 1], [], []>} : vector<8x8xf32>, vector<8x256xf32>, vector<8x256xf32> -> vector<8x256xf32>
    %76 = arith.addf %71, %75 : vector<8x256xf32>
    %77 = vector.extract_strided_slice %1 {offsets = [0, 255], sizes = [8, 1], strides = [1, 1]} : vector<8x256xf32> to vector<8x1xf32>
    %78 = vector.extract_strided_slice %1 {offsets = [0, 0], sizes = [8, 255], strides = [1, 1]} : vector<8x256xf32> to vector<8x255xf32>
    %79 = tpu.concatenate %77, %78 in 1 : vector<8x1xf32>, vector<8x255xf32> -> vector<8x256xf32>
    %80 = vector.extract_strided_slice %1 {offsets = [0, 1], sizes = [8, 255], strides = [1, 1]} : vector<8x256xf32> to vector<8x255xf32>
    %81 = vector.extract_strided_slice %1 {offsets = [0, 0], sizes = [8, 1], strides = [1, 1]} : vector<8x256xf32> to vector<8x1xf32>
    %82 = tpu.concatenate %80, %81 in 1 : vector<8x255xf32>, vector<8x1xf32> -> vector<8x256xf32>
    %83 = arith.select %26, %79, %82 : vector<8x256xi1>, vector<8x256xf32>
    %84 = vector.extract_strided_slice %83 {offsets = [0, 240], sizes = [8, 16], strides = [1, 1]} : vector<8x256xf32> to vector<8x16xf32>
    %85 = vector.extract_strided_slice %83 {offsets = [0, 0], sizes = [8, 240], strides = [1, 1]} : vector<8x256xf32> to vector<8x240xf32>
    %86 = tpu.concatenate %84, %85 in 1 : vector<8x16xf32>, vector<8x240xf32> -> vector<8x256xf32>
    %87 = vector.extract_strided_slice %83 {offsets = [0, 16], sizes = [8, 240], strides = [1, 1]} : vector<8x256xf32> to vector<8x240xf32>
    %88 = vector.extract_strided_slice %83 {offsets = [0, 0], sizes = [8, 16], strides = [1, 1]} : vector<8x256xf32> to vector<8x16xf32>
    %89 = tpu.concatenate %87, %88 in 1 : vector<8x240xf32>, vector<8x16xf32> -> vector<8x256xf32>
    %90 = arith.select %28, %89, %86 : vector<8x256xi1>, vector<8x256xf32>
    %c2 = arith.constant 2 : index
    %c0_25 = arith.constant 0 : index
    %c0_26 = arith.constant 0 : index
    %91 = vector.load %arg2[%c2, %c0_25, %c0_26] : memref<9x8x8xf32, #tpu.memory_space<vmem>>, vector<1x8x8xf32>
    %92 = vector.shape_cast %91 : vector<1x8x8xf32> to vector<8x8xf32>
    %cst_27 = arith.constant dense<0.000000e+00> : vector<8x256xf32>
    %93 = tpu.matmul %92, %90, %cst_27 {dimension_numbers = #tpu.dot_dimension_numbers<[1], [0], [0], [1], [0, 0, 1, 1], [], []>} : vector<8x8xf32>, vector<8x256xf32>, vector<8x256xf32> -> vector<8x256xf32>
    %94 = arith.addf %76, %93 : vector<8x256xf32>
    %c5 = arith.constant 5 : index
    %c0_28 = arith.constant 0 : index
    %c0_29 = arith.constant 0 : index
    %95 = vector.load %arg2[%c5, %c0_28, %c0_29] : memref<9x8x8xf32, #tpu.memory_space<vmem>>, vector<1x8x8xf32>
    %96 = vector.shape_cast %95 : vector<1x8x8xf32> to vector<8x8xf32>
    %cst_30 = arith.constant dense<0.000000e+00> : vector<8x256xf32>
    %97 = tpu.matmul %96, %83, %cst_30 {dimension_numbers = #tpu.dot_dimension_numbers<[1], [0], [0], [1], [0, 0, 1, 1], [], []>} : vector<8x8xf32>, vector<8x256xf32>, vector<8x256xf32> -> vector<8x256xf32>
    %98 = arith.addf %94, %97 : vector<8x256xf32>
    %99 = arith.select %30, %86, %89 : vector<8x256xi1>, vector<8x256xf32>
    %c8 = arith.constant 8 : index
    %c0_31 = arith.constant 0 : index
    %c0_32 = arith.constant 0 : index
    %100 = vector.load %arg2[%c8, %c0_31, %c0_32] : memref<9x8x8xf32, #tpu.memory_space<vmem>>, vector<1x8x8xf32>
    %101 = vector.shape_cast %100 : vector<1x8x8xf32> to vector<8x8xf32>
    %cst_33 = arith.constant dense<0.000000e+00> : vector<8x256xf32>
    %102 = tpu.matmul %101, %99, %cst_33 {dimension_numbers = #tpu.dot_dimension_numbers<[1], [0], [0], [1], [0, 0, 1, 1], [], []>} : vector<8x8xf32>, vector<8x256xf32>, vector<8x256xf32> -> vector<8x256xf32>
    %103 = arith.addf %98, %102 : vector<8x256xf32>
    %cst_34 = arith.constant dense<0.000000e+00> : vector<8xf32>
    %104 = vector.multi_reduction <add>, %103, %cst_34 [1] : vector<8x256xf32> to vector<8xf32>
    %105 = vector.shape_cast %104 : vector<8xf32> to vector<8x1xf32>
    %cst_35 = arith.constant 3.906250e-03 : f32
    %106 = vector.broadcast %cst_35 : f32 to vector<8x1xf32>
    %107 = arith.mulf %105, %106 : vector<8x1xf32>
    %108 = vector.broadcast %107 : vector<8x1xf32> to vector<8x256xf32>
    %109 = arith.subf %103, %108 : vector<8x256xf32>
    %110 = arith.mulf %109, %109 : vector<8x256xf32>
    %cst_36 = arith.constant dense<0.000000e+00> : vector<8xf32>
    %111 = vector.multi_reduction <add>, %110, %cst_36 [1] : vector<8x256xf32> to vector<8xf32>
    %112 = vector.shape_cast %111 : vector<8xf32> to vector<8x1xf32>
    %cst_37 = arith.constant 3.906250e-03 : f32
    %113 = vector.broadcast %cst_37 : f32 to vector<8x1xf32>
    %114 = arith.mulf %112, %113 : vector<8x1xf32>
    %cst_38 = arith.constant 9.99999974E-6 : f32
    %115 = vector.broadcast %cst_38 : f32 to vector<8x1xf32>
    %116 = arith.addf %114, %115 : vector<8x1xf32>
    %117 = math.rsqrt %116 : vector<8x1xf32>
    %118 = vector.broadcast %117 : vector<8x1xf32> to vector<8x256xf32>
    %119 = arith.mulf %109, %118 : vector<8x256xf32>
    %cst_39 = arith.constant 0.000000e+00 : f32
    %120 = vector.broadcast %cst_39 : f32 to vector<8x256xf32>
    %121 = arith.maximumf %119, %120 : vector<8x256xf32>
    %122 = vector.extract_strided_slice %121 {offsets = [0, 255], sizes = [8, 1], strides = [1, 1]} : vector<8x256xf32> to vector<8x1xf32>
    %123 = vector.extract_strided_slice %121 {offsets = [0, 0], sizes = [8, 255], strides = [1, 1]} : vector<8x256xf32> to vector<8x255xf32>
    %124 = tpu.concatenate %122, %123 in 1 : vector<8x1xf32>, vector<8x255xf32> -> vector<8x256xf32>
    %125 = vector.extract_strided_slice %121 {offsets = [0, 1], sizes = [8, 255], strides = [1, 1]} : vector<8x256xf32> to vector<8x255xf32>
    %126 = vector.extract_strided_slice %121 {offsets = [0, 0], sizes = [8, 1], strides = [1, 1]} : vector<8x256xf32> to vector<8x1xf32>
    %127 = tpu.concatenate %125, %126 in 1 : vector<8x255xf32>, vector<8x1xf32> -> vector<8x256xf32>
    %128 = arith.select %24, %127, %124 : vector<8x256xi1>, vector<8x256xf32>
    %129 = vector.extract_strided_slice %128 {offsets = [0, 240], sizes = [8, 16], strides = [1, 1]} : vector<8x256xf32> to vector<8x16xf32>
    %130 = vector.extract_strided_slice %128 {offsets = [0, 0], sizes = [8, 240], strides = [1, 1]} : vector<8x256xf32> to vector<8x240xf32>
    %131 = tpu.concatenate %129, %130 in 1 : vector<8x16xf32>, vector<8x240xf32> -> vector<8x256xf32>
    %132 = vector.extract_strided_slice %128 {offsets = [0, 16], sizes = [8, 240], strides = [1, 1]} : vector<8x256xf32> to vector<8x240xf32>
    %133 = vector.extract_strided_slice %128 {offsets = [0, 0], sizes = [8, 16], strides = [1, 1]} : vector<8x256xf32> to vector<8x16xf32>
    %134 = tpu.concatenate %132, %133 in 1 : vector<8x240xf32>, vector<8x16xf32> -> vector<8x256xf32>
    %135 = arith.select %28, %134, %131 : vector<8x256xi1>, vector<8x256xf32>
    %c0_40 = arith.constant 0 : index
    %c0_41 = arith.constant 0 : index
    %c0_42 = arith.constant 0 : index
    %136 = vector.load %arg3[%c0_40, %c0_41, %c0_42] : memref<9x8x8xf32, #tpu.memory_space<vmem>>, vector<1x8x8xf32>
    %137 = vector.shape_cast %136 : vector<1x8x8xf32> to vector<8x8xf32>
    %cst_43 = arith.constant dense<0.000000e+00> : vector<8x256xf32>
    %138 = tpu.matmul %137, %135, %cst_43 {dimension_numbers = #tpu.dot_dimension_numbers<[1], [0], [0], [1], [0, 0, 1, 1], [], []>} : vector<8x8xf32>, vector<8x256xf32>, vector<8x256xf32> -> vector<8x256xf32>
    %c3_44 = arith.constant 3 : index
    %c0_45 = arith.constant 0 : index
    %c0_46 = arith.constant 0 : index
    %139 = vector.load %arg3[%c3_44, %c0_45, %c0_46] : memref<9x8x8xf32, #tpu.memory_space<vmem>>, vector<1x8x8xf32>
    %140 = vector.shape_cast %139 : vector<1x8x8xf32> to vector<8x8xf32>
    %cst_47 = arith.constant dense<0.000000e+00> : vector<8x256xf32>
    %141 = tpu.matmul %140, %128, %cst_47 {dimension_numbers = #tpu.dot_dimension_numbers<[1], [0], [0], [1], [0, 0, 1, 1], [], []>} : vector<8x8xf32>, vector<8x256xf32>, vector<8x256xf32> -> vector<8x256xf32>
    %142 = arith.addf %138, %141 : vector<8x256xf32>
    %143 = arith.select %30, %131, %134 : vector<8x256xi1>, vector<8x256xf32>
    %c6_48 = arith.constant 6 : index
    %c0_49 = arith.constant 0 : index
    %c0_50 = arith.constant 0 : index
    %144 = vector.load %arg3[%c6_48, %c0_49, %c0_50] : memref<9x8x8xf32, #tpu.memory_space<vmem>>, vector<1x8x8xf32>
    %145 = vector.shape_cast %144 : vector<1x8x8xf32> to vector<8x8xf32>
    %cst_51 = arith.constant dense<0.000000e+00> : vector<8x256xf32>
    %146 = tpu.matmul %145, %143, %cst_51 {dimension_numbers = #tpu.dot_dimension_numbers<[1], [0], [0], [1], [0, 0, 1, 1], [], []>} : vector<8x8xf32>, vector<8x256xf32>, vector<8x256xf32> -> vector<8x256xf32>
    %147 = arith.addf %142, %146 : vector<8x256xf32>
    %148 = vector.extract_strided_slice %121 {offsets = [0, 240], sizes = [8, 16], strides = [1, 1]} : vector<8x256xf32> to vector<8x16xf32>
    %149 = vector.extract_strided_slice %121 {offsets = [0, 0], sizes = [8, 240], strides = [1, 1]} : vector<8x256xf32> to vector<8x240xf32>
    %150 = tpu.concatenate %148, %149 in 1 : vector<8x16xf32>, vector<8x240xf32> -> vector<8x256xf32>
    %151 = vector.extract_strided_slice %121 {offsets = [0, 16], sizes = [8, 240], strides = [1, 1]} : vector<8x256xf32> to vector<8x240xf32>
    %152 = vector.extract_strided_slice %121 {offsets = [0, 0], sizes = [8, 16], strides = [1, 1]} : vector<8x256xf32> to vector<8x16xf32>
    %153 = tpu.concatenate %151, %152 in 1 : vector<8x240xf32>, vector<8x16xf32> -> vector<8x256xf32>
    %154 = arith.select %28, %153, %150 : vector<8x256xi1>, vector<8x256xf32>
    %c1_52 = arith.constant 1 : index
    %c0_53 = arith.constant 0 : index
    %c0_54 = arith.constant 0 : index
    %155 = vector.load %arg3[%c1_52, %c0_53, %c0_54] : memref<9x8x8xf32, #tpu.memory_space<vmem>>, vector<1x8x8xf32>
    %156 = vector.shape_cast %155 : vector<1x8x8xf32> to vector<8x8xf32>
    %cst_55 = arith.constant dense<0.000000e+00> : vector<8x256xf32>
    %157 = tpu.matmul %156, %154, %cst_55 {dimension_numbers = #tpu.dot_dimension_numbers<[1], [0], [0], [1], [0, 0, 1, 1], [], []>} : vector<8x8xf32>, vector<8x256xf32>, vector<8x256xf32> -> vector<8x256xf32>
    %158 = arith.addf %147, %157 : vector<8x256xf32>
    %c4_56 = arith.constant 4 : index
    %c0_57 = arith.constant 0 : index
    %c0_58 = arith.constant 0 : index
    %159 = vector.load %arg3[%c4_56, %c0_57, %c0_58] : memref<9x8x8xf32, #tpu.memory_space<vmem>>, vector<1x8x8xf32>
    %160 = vector.shape_cast %159 : vector<1x8x8xf32> to vector<8x8xf32>
    %cst_59 = arith.constant dense<0.000000e+00> : vector<8x256xf32>
    %161 = tpu.matmul %160, %121, %cst_59 {dimension_numbers = #tpu.dot_dimension_numbers<[1], [0], [0], [1], [0, 0, 1, 1], [], []>} : vector<8x8xf32>, vector<8x256xf32>, vector<8x256xf32> -> vector<8x256xf32>
    %162 = arith.addf %158, %161 : vector<8x256xf32>
    %163 = arith.select %30, %150, %153 : vector<8x256xi1>, vector<8x256xf32>
    %c7_60 = arith.constant 7 : index
    %c0_61 = arith.constant 0 : index
    %c0_62 = arith.constant 0 : index
    %164 = vector.load %arg3[%c7_60, %c0_61, %c0_62] : memref<9x8x8xf32, #tpu.memory_space<vmem>>, vector<1x8x8xf32>
    %165 = vector.shape_cast %164 : vector<1x8x8xf32> to vector<8x8xf32>
    %cst_63 = arith.constant dense<0.000000e+00> : vector<8x256xf32>
    %166 = tpu.matmul %165, %163, %cst_63 {dimension_numbers = #tpu.dot_dimension_numbers<[1], [0], [0], [1], [0, 0, 1, 1], [], []>} : vector<8x8xf32>, vector<8x256xf32>, vector<8x256xf32> -> vector<8x256xf32>
    %167 = arith.addf %162, %166 : vector<8x256xf32>
    %168 = vector.extract_strided_slice %121 {offsets = [0, 255], sizes = [8, 1], strides = [1, 1]} : vector<8x256xf32> to vector<8x1xf32>
    %169 = vector.extract_strided_slice %121 {offsets = [0, 0], sizes = [8, 255], strides = [1, 1]} : vector<8x256xf32> to vector<8x255xf32>
    %170 = tpu.concatenate %168, %169 in 1 : vector<8x1xf32>, vector<8x255xf32> -> vector<8x256xf32>
    %171 = vector.extract_strided_slice %121 {offsets = [0, 1], sizes = [8, 255], strides = [1, 1]} : vector<8x256xf32> to vector<8x255xf32>
    %172 = vector.extract_strided_slice %121 {offsets = [0, 0], sizes = [8, 1], strides = [1, 1]} : vector<8x256xf32> to vector<8x1xf32>
    %173 = tpu.concatenate %171, %172 in 1 : vector<8x255xf32>, vector<8x1xf32> -> vector<8x256xf32>
    %174 = arith.select %26, %170, %173 : vector<8x256xi1>, vector<8x256xf32>
    %175 = vector.extract_strided_slice %174 {offsets = [0, 240], sizes = [8, 16], strides = [1, 1]} : vector<8x256xf32> to vector<8x16xf32>
    %176 = vector.extract_strided_slice %174 {offsets = [0, 0], sizes = [8, 240], strides = [1, 1]} : vector<8x256xf32> to vector<8x240xf32>
    %177 = tpu.concatenate %175, %176 in 1 : vector<8x16xf32>, vector<8x240xf32> -> vector<8x256xf32>
    %178 = vector.extract_strided_slice %174 {offsets = [0, 16], sizes = [8, 240], strides = [1, 1]} : vector<8x256xf32> to vector<8x240xf32>
    %179 = vector.extract_strided_slice %174 {offsets = [0, 0], sizes = [8, 16], strides = [1, 1]} : vector<8x256xf32> to vector<8x16xf32>
    %180 = tpu.concatenate %178, %179 in 1 : vector<8x240xf32>, vector<8x16xf32> -> vector<8x256xf32>
    %181 = arith.select %28, %180, %177 : vector<8x256xi1>, vector<8x256xf32>
    %c2_64 = arith.constant 2 : index
    %c0_65 = arith.constant 0 : index
    %c0_66 = arith.constant 0 : index
    %182 = vector.load %arg3[%c2_64, %c0_65, %c0_66] : memref<9x8x8xf32, #tpu.memory_space<vmem>>, vector<1x8x8xf32>
    %183 = vector.shape_cast %182 : vector<1x8x8xf32> to vector<8x8xf32>
    %cst_67 = arith.constant dense<0.000000e+00> : vector<8x256xf32>
    %184 = tpu.matmul %183, %181, %cst_67 {dimension_numbers = #tpu.dot_dimension_numbers<[1], [0], [0], [1], [0, 0, 1, 1], [], []>} : vector<8x8xf32>, vector<8x256xf32>, vector<8x256xf32> -> vector<8x256xf32>
    %185 = arith.addf %167, %184 : vector<8x256xf32>
    %c5_68 = arith.constant 5 : index
    %c0_69 = arith.constant 0 : index
    %c0_70 = arith.constant 0 : index
    %186 = vector.load %arg3[%c5_68, %c0_69, %c0_70] : memref<9x8x8xf32, #tpu.memory_space<vmem>>, vector<1x8x8xf32>
    %187 = vector.shape_cast %186 : vector<1x8x8xf32> to vector<8x8xf32>
    %cst_71 = arith.constant dense<0.000000e+00> : vector<8x256xf32>
    %188 = tpu.matmul %187, %174, %cst_71 {dimension_numbers = #tpu.dot_dimension_numbers<[1], [0], [0], [1], [0, 0, 1, 1], [], []>} : vector<8x8xf32>, vector<8x256xf32>, vector<8x256xf32> -> vector<8x256xf32>
    %189 = arith.addf %185, %188 : vector<8x256xf32>
    %190 = arith.select %30, %177, %180 : vector<8x256xi1>, vector<8x256xf32>
    %c8_72 = arith.constant 8 : index
    %c0_73 = arith.constant 0 : index
    %c0_74 = arith.constant 0 : index
    %191 = vector.load %arg3[%c8_72, %c0_73, %c0_74] : memref<9x8x8xf32, #tpu.memory_space<vmem>>, vector<1x8x8xf32>
    %192 = vector.shape_cast %191 : vector<1x8x8xf32> to vector<8x8xf32>
    %cst_75 = arith.constant dense<0.000000e+00> : vector<8x256xf32>
    %193 = tpu.matmul %192, %190, %cst_75 {dimension_numbers = #tpu.dot_dimension_numbers<[1], [0], [0], [1], [0, 0, 1, 1], [], []>} : vector<8x8xf32>, vector<8x256xf32>, vector<8x256xf32> -> vector<8x256xf32>
    %194 = arith.addf %189, %193 : vector<8x256xf32>
    %cst_76 = arith.constant dense<0.000000e+00> : vector<8xf32>
    %195 = vector.multi_reduction <add>, %194, %cst_76 [1] : vector<8x256xf32> to vector<8xf32>
    %196 = vector.shape_cast %195 : vector<8xf32> to vector<8x1xf32>
    %cst_77 = arith.constant 3.906250e-03 : f32
    %197 = vector.broadcast %cst_77 : f32 to vector<8x1xf32>
    %198 = arith.mulf %196, %197 : vector<8x1xf32>
    %199 = vector.broadcast %198 : vector<8x1xf32> to vector<8x256xf32>
    %200 = arith.subf %194, %199 : vector<8x256xf32>
    %201 = arith.mulf %200, %200 : vector<8x256xf32>
    %cst_78 = arith.constant dense<0.000000e+00> : vector<8xf32>
    %202 = vector.multi_reduction <add>, %201, %cst_78 [1] : vector<8x256xf32> to vector<8xf32>
    %203 = vector.shape_cast %202 : vector<8xf32> to vector<8x1xf32>
    %cst_79 = arith.constant 3.906250e-03 : f32
    %204 = vector.broadcast %cst_79 : f32 to vector<8x1xf32>
    %205 = arith.mulf %203, %204 : vector<8x1xf32>
    %cst_80 = arith.constant 9.99999974E-6 : f32
    %206 = vector.broadcast %cst_80 : f32 to vector<8x1xf32>
    %207 = arith.addf %205, %206 : vector<8x1xf32>
    %208 = math.rsqrt %207 : vector<8x1xf32>
    %209 = vector.broadcast %208 : vector<8x1xf32> to vector<8x256xf32>
    %210 = arith.mulf %200, %209 : vector<8x256xf32>
    %211 = arith.addf %1, %210 : vector<8x256xf32>
    %c0_81 = arith.constant 0 : index
    %c0_82 = arith.constant 0 : index
    %c0_83 = arith.constant 0 : index
    %212 = vector.load %arg4[%c0_81, %c0_82, %c0_83] : memref<1x8x256xf32, #tpu.memory_space<vmem>>, vector<1x8x256xf32>
    %213 = vector.shape_cast %212 : vector<1x8x256xf32> to vector<8x256xf32>
    %214 = vector.shape_cast %211 : vector<8x256xf32> to vector<1x8x256xf32>
    tpu.vector_store %arg4[%c0_81, %c0_82, %c0_83], %214 {strides = array<i32>} : memref<1x8x256xf32, #tpu.memory_space<vmem>>, vector<1x8x256xf32>,
    return
  }
  func.func @transform_0(%arg0: i32) -> (i32, i32, i32) {
    %c0_i32 = arith.constant 0 : i32
    %c0_i32_0 = arith.constant 0 : i32
    %c0_i32_1 = arith.constant 0 : i32
    return %arg0, %c0_i32, %c0_i32_0 : i32, i32, i32
  }
  func.func @transform_1(%arg0: i32) -> (i32, i32, i32) {
    %c0_i32 = arith.constant 0 : i32
    %c0_i32_0 = arith.constant 0 : i32
    %c0_i32_1 = arith.constant 0 : i32
    %c0_i32_2 = arith.constant 0 : i32
    return %c0_i32, %c0_i32_0, %c0_i32_1 : i32, i32, i32
  }
  func.func @transform_2(%arg0: i32) -> (i32, i32, i32) {
    %c0_i32 = arith.constant 0 : i32
    %c0_i32_0 = arith.constant 0 : i32
    %c0_i32_1 = arith.constant 0 : i32
    %c0_i32_2 = arith.constant 0 : i32
    return %c0_i32, %c0_i32_0, %c0_i32_1 : i32, i32, i32
  }
  func.func @transform_3(%arg0: i32) -> (i32, i32, i32) {
    %c0_i32 = arith.constant 0 : i32
    %c0_i32_0 = arith.constant 0 : i32
    %c0_i32_1 = arith.constant 0 : i32
    return %arg0, %c0_i32, %c0_i32_0 : i32, i32, i32
  }
}

</mosaic_0001>

<llo_original>
// kernel: tpu_custom_call.1
$region0: #{tpu_custom_call.1}
  #allocation0 [shape = 'u32[]', space=smem, size = 0x4, offset = 0x4, fixed_abs, tag = 'smem constant byte address 0x4 - core index']
  #allocation1 [shape = 'u32[144,128]{1,0:T(1,128)}', space=vmem, size = 0x12000, scoped, tag = 'internal scratch']
  %s0 = inlined_call_operand.vmem [shape: f32[2,8,256], index: 0, kind: input, shape index: {}]
  %s1 = inlined_call_operand.vmem [shape: f32[9,8,8], index: 1, kind: input, shape index: {}]
  %s2 = inlined_call_operand.vmem [shape: f32[9,8,8], index: 2, kind: input, shape index: {}]
  %s3 = inlined_call_operand.hbm [shape: f32[2,8,256], index: 3, kind: output, shape index: {}]
  %s4 = sld [smem:[#allocation0]]
  $region45: #{tpu_custom_call.1} parent=0
    _
  %s6 = ssub.s32 1, %s4
  %s7 = scalar_select 0, %s6, %s4
  $region1: #{tpu_custom_call.1} parent=0
    #allocation2 [shape = 'u8[16384]{0}', space=vmem, size = 0x4000, scoped, tag = 'output window, operand 0']
    #allocation3 [shape = 's32[2]{0}', space=sflag, size = 0x8, scoped, tag = 'scoped memory for tpu_custom_call.1']
    %8 = vsyncpa [#allocation3], 0
    %s9 = scalar_lea.sflag [#allocation3], 1
    %10 = vsyncpa %s9, 0
    loop: start=0, step=1, limit=4
    $region2: #{tpu_custom_call.1} parent=1 // loop_pre_header
      _
    $region3: #{tpu_custom_call.1} parent=1 // loop_header
      %s12 = sphi 0, %s16
      %p13 = scmp.ge.s32.totalorder %s12, 4
      %s22 = sphi 0, %s24
      %s25 = sphi 0, %s22
      %s26 = sphi 0, %s25
      %s42 = sphi 0, %s26
      %s46 = sphi 0, %s46
      %s48 = sphi 0, %s46
      %s49 = sphi 0, %s48
      %s63 = sphi 0, %s49
      %s67 = sphi 0, %s67
      %s69 = sphi 0, %s67
      %s70 = sphi 0, %s69
      %s84 = sphi 0, %s70
      %s90 = sphi 0, %s92
      %s93 = sphi 0, %s90
      %s94 = sphi 0, %s93
      %s110 = sphi 0, %s94
    $region4: #{tpu_custom_call.1} parent=1 // loop_header_branch
      %15 = sbr.rel (%p13) target = $region8
    $region5: #{tpu_custom_call.1} parent=1 // loop_body
      %s17 = ssub.s32 %s12, 1
      %s18 = ssub.s32 %s12, 2
      %s19 = sadd.s32 %s12, 1
      %s20 = ssub.s32 %s12, %s19
      %p21 = scmp.eq.s32.totalorder %s20, 0
      %s23 = sadd.s32 %s22, 1
      %s24 = scalar_select %p21, %s22, %s23
      %p27 = pneg %p21
      %p28 = scmp.eq.s32.totalorder %s12, 1
      %p29 = por %p27, %p28
      %p30 = scmp.ne.s32.totalorder %s22, %s25
      %p31 = scmp.eq.s32.totalorder %s12, 0
      %p32 = por %p30, %p31
      %p33 = scmp.ne.s32.totalorder %s22, %s25
      %p34 = scmp.eq.s32.totalorder %s17, 1
      %p35 = por %p33, %p34
      %p36 = scmp.ne.s32.totalorder %s25, %s26
      %p37 = scmp.eq.s32.totalorder %s17, 0
      %p38 = por %p36, %p37
      %p39 = scmp.ne.s32.totalorder %s25, %s26
      %p40 = scmp.eq.s32.totalorder %s18, 1
      %p41 = por %p39, %p40
      %p43 = scmp.ne.s32.totalorder %s26, %s42
      %p44 = scmp.eq.s32.totalorder %s18, 0
      %p45 = por %p43, %p44
      %s47 = sadd.s32 %s46, 1
      %p50 = scmp.eq.s32.totalorder %s12, 1
      %p51 = scmp.ne.s32.totalorder %s46, %s48
      %p52 = scmp.eq.s32.totalorder %s12, 0
      %p53 = por %p51, %p52
      %p54 = scmp.ne.s32.totalorder %s46, %s48
      %p55 = scmp.eq.s32.totalorder %s17, 1
      %p56 = por %p54, %p55
      %p57 = scmp.ne.s32.totalorder %s48, %s49
      %p58 = scmp.eq.s32.totalorder %s17, 0
      %p59 = por %p57, %p58
      %p60 = scmp.ne.s32.totalorder %s48, %s49
      %p61 = scmp.eq.s32.totalorder %s18, 1
      %p62 = por %p60, %p61
      %p64 = scmp.ne.s32.totalorder %s49, %s63
      %p65 = scmp.eq.s32.totalorder %s18, 0
      %p66 = por %p64, %p65
      %s68 = sadd.s32 %s67, 1
      %p71 = scmp.eq.s32.totalorder %s12, 1
      %p72 = scmp.ne.s32.totalorder %s67, %s69
      %p73 = scmp.eq.s32.totalorder %s12, 0
      %p74 = por %p72, %p73
      %p75 = scmp.ne.s32.totalorder %s67, %s69
      %p76 = scmp.eq.s32.totalorder %s17, 1
      %p77 = por %p75, %p76
      %p78 = scmp.ne.s32.totalorder %s69, %s70
      %p79 = scmp.eq.s32.totalorder %s17, 0
      %p80 = por %p78, %p79
      %p81 = scmp.ne.s32.totalorder %s69, %s70
      %p82 = scmp.eq.s32.totalorder %s18, 1
      %p83 = por %p81, %p82
      %p85 = scmp.ne.s32.totalorder %s70, %s84
      %p86 = scmp.eq.s32.totalorder %s18, 0
      %p87 = por %p85, %p86
      %s88 = ssub.s32 %s12, %s19
      %p89 = scmp.eq.s32.totalorder %s88, 0
      %s91 = sadd.s32 %s90, 1
      %s92 = scalar_select %p89, %s90, %s91
      %p95 = pneg %p89
      %p96 = scmp.eq.s32.totalorder %s12, 1
      %p97 = por %p95, %p96
      %p98 = scmp.ne.s32.totalorder %s90, %s93
      %p99 = scmp.eq.s32.totalorder %s12, 0
      %p100 = por %p98, %p99
      %p101 = scmp.ne.s32.totalorder %s90, %s93
      %p102 = scmp.eq.s32.totalorder %s17, 1
      %p103 = por %p101, %p102
      %p104 = scmp.ne.s32.totalorder %s93, %s94
      %p105 = scmp.eq.s32.totalorder %s17, 0
      %p106 = por %p104, %p105
      %p107 = scmp.ne.s32.totalorder %s93, %s94
      %p108 = scmp.eq.s32.totalorder %s18, 1
      %p109 = por %p107, %p108
      %p111 = scmp.ne.s32.totalorder %s94, %s110
      %p112 = scmp.eq.s32.totalorder %s18, 0
      %p113 = por %p111, %p112
      %p114 = scmp.le.s32.totalorder 1, %s12
      %p115 = scmp.lt.s32.totalorder %s12, 3
      %p116 = pnand %p114, %p115
      %p117 = pneg %p116
      // Predicated region
      $region9: #{tpu_custom_call.1} parent=5 // pred_check
        _
      $region10: #{tpu_custom_call.1} parent=5 // pred_check_branch
        %119 = sbr.rel (%p116) target = $region12
      $region11: #{tpu_custom_call.1} parent=5 // pred_region
        %s120 = ssub.s32 %s12, 1
        // Predicated region
        $region13: #{tpu_custom_call.1} parent=11 // pred_check
          %p121 = pneg %p59
        $region14: #{tpu_custom_call.1} parent=11 // pred_check_branch
          %123 = sbr.rel (%p121) target = $region16
        $region15: #{tpu_custom_call.1} parent=11 // pred_region
          _
        $region16: #{tpu_custom_call.1} parent=11 // pred_fallthru
          _
        // Predicated region
        $region17: #{tpu_custom_call.1} parent=11 // pred_check
          %p124 = pneg %p80
        $region18: #{tpu_custom_call.1} parent=11 // pred_check_branch
          %126 = sbr.rel (%p124) target = $region20
        $region19: #{tpu_custom_call.1} parent=11 // pred_region
          _
        $region20: #{tpu_custom_call.1} parent=11 // pred_fallthru
          _
      $region12: #{tpu_custom_call.1} parent=5 // pred_fallthru
        _
      %p127 = scmp.lt.s32.totalorder %s12, 2
      // Predicated region
      $region21: #{tpu_custom_call.1} parent=5 // pred_check
        %p128 = pneg %p127
      $region22: #{tpu_custom_call.1} parent=5 // pred_check_branch
        %130 = sbr.rel (%p128) target = $region24
      $region23: #{tpu_custom_call.1} parent=5 // pred_region
        // Predicated region
        $region25: #{tpu_custom_call.1} parent=23 // pred_check
          %p131 = pneg %p32
        $region26: #{tpu_custom_call.1} parent=23 // pred_check_branch
          %133 = sbr.rel (%p131) target = $region28
        $region27: #{tpu_custom_call.1} parent=23 // pred_region
          %p134 = scmp.lt.s32.totalorder %s12, 1
          %s135 = scalar_select %p134, %s12, 1
          %s136 = smul.addr %s135, 2
          %s137 = smul.addr %s136, 8
          %s138 = scalar_lea.vmem %s0, %s137
        $region28: #{tpu_custom_call.1} parent=23 // pred_fallthru
          _
      $region24: #{tpu_custom_call.1} parent=5 // pred_fallthru
        _
      %p139 = scmp.le.s32.totalorder 1, %s12
      %p140 = scmp.lt.s32.totalorder %s12, 3
      %p141 = pnand %p139, %p140
      %p142 = pneg %p141
      // Predicated region
      $region29: #{tpu_custom_call.1} parent=5 // pred_check
        _
      $region30: #{tpu_custom_call.1} parent=5 // pred_check_branch
        %144 = sbr.rel (%p141) target = $region32
      $region31: #{tpu_custom_call.1} parent=5 // pred_region
        %s145 = ssub.s32 %s12, 1
        %p146 = scmp.lt.s32.totalorder %s17, 1
        %s147 = scalar_select %p146, %s17, 1
        %s148 = smul.addr %s147, 2
        %s149 = smul.addr %s148, 8
        %s150 = scalar_lea.vmem %s0, %s149
        %p151 = pneg %p38
        %p152 = pneg %p35
        %p153 = pneg %p59
        %p154 = pneg %p56
        %p155 = pneg %p80
        %p156 = pneg %p77
        %p157 = pneg %p106
        %p158 = pneg %p103
        %s159 = sand.u32 %s93, 1
        %s160 = scalar_lea.sflag [#allocation3], %s159
        %s161 = sand.u32 %s93, 1
        %s162 = smul.addr %s161, 16
        %s163 = scalar_lea.vmem [#allocation2], %s162
        %p164 = scmp.lt.s32.totalorder %s17, 1
        %s165 = scalar_select %p164, %s17, 1
        %s166 = smul.addr %s165, 2
        %s167 = smul.addr %s166, 8
        %s168 = scalar_lea.vmem %s0, %s167
        %v169 = vld [vmem:[%s168] sm:$0xff]
        %v170 = vld [vmem:[%s168 + $0x8] sm:$0xff]
        %v171 = vlaneseq
        %v172 = vand.u32 %v171, 127
        %v173 = vadd.s32 %v172, 128
        %vm174 = vcmp.lt.s32.totalorder %v172, 0
        %v175 = vsub.s32 0, %v172
        %v176 = vsel %vm174, %v175, %v172
        %v177 = vshrl.u32 %v176, 4
        %v178 = vand.u32 %v176, 15
        %v179 = vsub.s32 0, %v178
        %v180 = vsel %vm174, %v179, %v178
        %vm181 = vcmp.lt.s32.totalorder %v173, 0
        %v182 = vsub.s32 0, %v173
        %v183 = vsel %vm181, %v182, %v173
        %v184 = vshrl.u32 %v183, 4
        %v185 = vand.u32 %v183, 15
        %v186 = vsub.s32 0, %v185
        %v187 = vsel %vm181, %v186, %v185
        %vm188 = vcmp.ne.s32.totalorder %v180, 0
        %vm189 = vcmp.ne.s32.totalorder %v187, 0
        %vm190 = vcmp.lt.s32.totalorder %v180, 0
        %vm191 = vcmp.lt.s32.totalorder %v187, 0
        %vm192 = vmand %vm190, %vm188
        %vm193 = vmand %vm191, %vm189
        %v194 = vadd.s32 %v180, 16
        %v195 = vadd.s32 %v187, 16
        %v196 = vsel %vm192, %v194, %v180
        %v197 = vsel %vm193, %v195, %v187
        %vm198 = vcmp.eq.s32.totalorder %v196, 0
        %vm199 = vcmp.eq.s32.totalorder %v197, 0
        %vm200 = vcmp.eq.s32.totalorder %v196, 15
        %vm201 = vcmp.eq.s32.totalorder %v197, 15
        %vm202 = vcmp.lt.s32.totalorder %v172, 16
        %vm203 = vcmp.lt.s32.totalorder %v173, 16
        %vm204 = vcmp.ge.s32.totalorder %v172, 240
        %vm205 = vcmp.ge.s32.totalorder %v173, 240
        %207 = vrot.lane.b32.xlu0 %v170, 1
        %v208 = vpop.permute.xlu0 %207
        %211 = vrot.lane.b32.xlu0 %v169, 1
        %v212 = vpop.permute.xlu0 %211
        %vm213 = vcmask 7168
        %v214 = vsel %vm213, %v212, %v208
        %v217 = vsel %vm213, %v208, %v212
        %218 = vrot.lane.b32.xlu0 %v169, 127
        %v219 = vpop.permute.xlu0 %218
        %220 = vrot.lane.b32.xlu0 %v170, 127
        %v221 = vpop.permute.xlu0 %220
        %vm222 = vcmask 1039360
        %v223 = vsel %vm222, %v219, %v221
        %v227 = vsel %vm222, %v221, %v219
        %v228 = vsel %vm198, %v223, %v217
        %v229 = vsel %vm199, %v227, %v214
        %231 = vrot.lane.b32.xlu0 %v229, 16
        %v232 = vpop.permute.xlu0 %231
        %235 = vrot.lane.b32.xlu0 %v228, 16
        %v236 = vpop.permute.xlu0 %235
        %vm237 = vcmask 130048
        %v238 = vsel %vm237, %v236, %v232
        %v241 = vsel %vm237, %v232, %v236
        %242 = vrot.lane.b32.xlu0 %v228, 112
        %v243 = vpop.permute.xlu0 %242
        %244 = vrot.lane.b32.xlu0 %v229, 112
        %v245 = vpop.permute.xlu0 %244
        %vm246 = vcmask 916480
        %v247 = vsel %vm246, %v243, %v245
        %v251 = vsel %vm246, %v245, %v243
        %v252 = vsel %vm202, %v247, %v241
        %v253 = vsel %vm203, %v251, %v238
        %v254 = vld [vmem:[%s1] sm:$0xff]
        %s255 = scalar_lea.vmem %s1, 24
        %v256 = vld [vmem:[%s255] sm:$0xff]
        %vm257 = vcmask 64512
        %v259 = vsel %vm257, %v256, 0
        %261 = vmatprep.subr.mxu0 %v229
        %262 = vmatpush1.msra.mxu0 %v228
        %263 = vmatprep.subr.mxu0 0.0
        %264 = vmatpush1.msra.mxu0 0.0
        %265 = vmatprep.subr.mxu0 0.0
        %266 = vmatpush1.msra.mxu0 0.0
        %267 = vmatprep.subr.mxu0 0.0
        %268 = vmatpush1.msra.mxu0 0.0
        %269 = vmatprep.subr.mxu0 0.0
        %270 = vmatpush1.msra.mxu0 0.0
        %271 = vmatprep.subr.mxu0 0.0
        %272 = vmatpush1.msra.mxu0 0.0
        %273 = vmatprep.subr.mxu0 0.0
        %274 = vmatpush1.msra.mxu0 0.0
        %275 = vmatprep.subr.mxu0 0.0
        %276 = vmatpush1.msra.mxu0 0.0
        %277 = vmatprep.subr.mxu0 0.0
        %278 = vmatpush1.msra.mxu0 0.0
        %279 = vmatprep.subr.mxu0 0.0
        %280 = vmatpush1.msra.mxu0 0.0
        %281 = vmatprep.subr.mxu0 0.0
        %282 = vmatpush1.msra.mxu0 0.0
        %283 = vmatprep.subr.mxu0 0.0
        %284 = vmatpush1.msra.mxu0 0.0
        %285 = vmatprep.subr.mxu0 0.0
        %286 = vmatpush1.msra.mxu0 0.0
        %287 = vmatprep.subr.mxu0 0.0
        %288 = vmatpush1.msra.mxu0 0.0
        %289 = vmatprep.subr.mxu0 0.0
        %290 = vmatpush1.msra.mxu0 0.0
        %291 = vmatprep.subr.mxu0 0.0
        %292 = vmatpush1.msra.mxu0 0.0
        %293 = vmatprep.subr.mxu0 0.0
        %294 = vmatpush1.msra.mxu0 0.0
        %295 = vmatprep.subr.mxu0 0.0
        %296 = vmatpush1.msra.mxu0 0.0
        %297 = vmatprep.subr.mxu0 0.0
        %298 = vmatpush1.msra.mxu0 0.0
        %299 = vmatprep.subr.mxu0 0.0
        %300 = vmatpush1.msra.mxu0 0.0
        %301 = vmatprep.subr.mxu0 0.0
        %302 = vmatpush1.msra.mxu0 0.0
        %303 = vmatprep.subr.mxu0 0.0
        %304 = vmatpush1.msra.mxu0 0.0
        %305 = vmatprep.subr.mxu0 0.0
        %306 = vmatpush1.msra.mxu0 0.0
        %307 = vmatprep.subr.mxu0 0.0
        %308 = vmatpush1.msra.mxu0 0.0
        %309 = vmatprep.subr.mxu0 0.0
        %310 = vmatpush1.msra.mxu0 0.0
        %311 = vmatprep.subr.mxu0 0.0
        %312 = vmatpush1.msra.mxu0 0.0
        %313 = vmatprep.subr.mxu0 0.0
        %314 = vmatpush1.msra.mxu0 0.0
        %315 = vmatprep.subr.mxu0 0.0
        %316 = vmatpush1.msra.mxu0 0.0
        %317 = vmatprep.subr.mxu0 0.0
        %318 = vmatpush1.msra.mxu0 0.0
        %319 = vmatprep.subr.mxu0 0.0
        %320 = vmatpush1.msra.mxu0 0.0
        %321 = vmatprep.subr.mxu0 0.0
        %322 = vmatpush1.msra.mxu0 0.0
        %323 = vmatprep.subr.mxu0 0.0
        %324 = vmatpush1.msra.mxu0 0.0
        %325 = vmatprep.mubr.f32.mxu0 0.0
        %326 = vmatmul.mubr.f32.gmra.mrb[0].mxu0 %v259
        %v327 = vpop.f32.mrb[0].mxu0
        %v328 = vadd.f32 0.0, %v327
        %v329 = vpop.f32.mrb[0].mxu0
        %v330 = vadd.f32 0.0, %v329
        %331 = vdwg.mxu0
        %v333 = vsel %vm257, %v254, 0
        %335 = vmatprep.subr.mxu0 %v253
        %336 = vmatpush1.msra.mxu0 %v252
        %337 = vmatprep.subr.mxu0 0.0
        %338 = vmatpush1.msra.mxu0 0.0
        %339 = vmatprep.subr.mxu0 0.0
        %340 = vmatpush1.msra.mxu0 0.0
        %341 = vmatprep.subr.mxu0 0.0
        %342 = vmatpush1.msra.mxu0 0.0
        %343 = vmatprep.subr.mxu0 0.0
        %344 = vmatpush1.msra.mxu0 0.0
        %345 = vmatprep.subr.mxu0 0.0
        %346 = vmatpush1.msra.mxu0 0.0
        %347 = vmatprep.subr.mxu0 0.0
        %348 = vmatpush1.msra.mxu0 0.0
        %349 = vmatprep.subr.mxu0 0.0
        %350 = vmatpush1.msra.mxu0 0.0
        %351 = vmatprep.subr.mxu0 0.0
        %352 = vmatpush1.msra.mxu0 0.0
        %353 = vmatprep.subr.mxu0 0.0
        %354 = vmatpush1.msra.mxu0 0.0
        %355 = vmatprep.subr.mxu0 0.0
        %356 = vmatpush1.msra.mxu0 0.0
        %357 = vmatprep.subr.mxu0 0.0
        %358 = vmatpush1.msra.mxu0 0.0
        %359 = vmatprep.subr.mxu0 0.0
        %360 = vmatpush1.msra.mxu0 0.0
        %361 = vmatprep.subr.mxu0 0.0
        %362 = vmatpush1.msra.mxu0 0.0
        %363 = vmatprep.subr.mxu0 0.0
        %364 = vmatpush1.msra.mxu0 0.0
        %365 = vmatprep.subr.mxu0 0.0
        %366 = vmatpush1.msra.mxu0 0.0
        %367 = vmatprep.subr.mxu0 0.0
        %368 = vmatpush1.msra.mxu0 0.0
        %369 = vmatprep.subr.mxu0 0.0
        %370 = vmatpush1.msra.mxu0 0.0
        %371 = vmatprep.subr.mxu0 0.0
        %372 = vmatpush1.msra.mxu0 0.0
        %373 = vmatprep.subr.mxu0 0.0
        %374 = vmatpush1.msra.mxu0 0.0
        %375 = vmatprep.subr.mxu0 0.0
        %376 = vmatpush1.msra.mxu0 0.0
        %377 = vmatprep.subr.mxu0 0.0
        %378 = vmatpush1.msra.mxu0 0.0
        %379 = vmatprep.subr.mxu0 0.0
        %380 = vmatpush1.msra.mxu0 0.0
        %381 = vmatprep.subr.mxu0 0.0
        %382 = vmatpush1.msra.mxu0 0.0
        %383 = vmatprep.subr.mxu0 0.0
        %384 = vmatpush1.msra.mxu0 0.0
        %385 = vmatprep.subr.mxu0 0.0
        %386 = vmatpush1.msra.mxu0 0.0
        %387 = vmatprep.subr.mxu0 0.0
        %388 = vmatpush1.msra.mxu0 0.0
        %389 = vmatprep.subr.mxu0 0.0
        %390 = vmatpush1.msra.mxu0 0.0
        %391 = vmatprep.subr.mxu0 0.0
        %392 = vmatpush1.msra.mxu0 0.0
        %393 = vmatprep.subr.mxu0 0.0
        %394 = vmatpush1.msra.mxu0 0.0
        %395 = vmatprep.subr.mxu0 0.0
        %396 = vmatpush1.msra.mxu0 0.0
        %397 = vmatprep.subr.mxu0 0.0
        %398 = vmatpush1.msra.mxu0 0.0
        %399 = vmatprep.mubr.f32.mxu0 0.0
        %400 = vmatmul.mubr.f32.gmra.mrb[0].mxu0 %v333
        %v401 = vpop.f32.mrb[0].mxu0
        %v402 = vadd.f32 %v328, %v401
        %v403 = vpop.f32.mrb[0].mxu0
        %v404 = vadd.f32 %v330, %v403
        %405 = vdwg.mxu0
        %v406 = vsel %vm204, %v241, %v247
        %v407 = vsel %vm205, %v238, %v251
        %s408 = scalar_lea.vmem %s1, 48
        %v409 = vld [vmem:[%s408] sm:$0xff]
        %v411 = vsel %vm257, %v409, 0
        %413 = vmatprep.subr.mxu0 %v407
        %414 = vmatpush1.msra.mxu0 %v406
        %415 = vmatprep.subr.mxu0 0.0
        %416 = vmatpush1.msra.mxu0 0.0
        %417 = vmatprep.subr.mxu0 0.0
        %418 = vmatpush1.msra.mxu0 0.0
        %419 = vmatprep.subr.mxu0 0.0
        %420 = vmatpush1.msra.mxu0 0.0
        %421 = vmatprep.subr.mxu0 0.0
        %422 = vmatpush1.msra.mxu0 0.0
        %423 = vmatprep.subr.mxu0 0.0
        %424 = vmatpush1.msra.mxu0 0.0
        %425 = vmatprep.subr.mxu0 0.0
        %426 = vmatpush1.msra.mxu0 0.0
        %427 = vmatprep.subr.mxu0 0.0
        %428 = vmatpush1.msra.mxu0 0.0
        %429 = vmatprep.subr.mxu0 0.0
        %430 = vmatpush1.msra.mxu0 0.0
        %431 = vmatprep.subr.mxu0 0.0
        %432 = vmatpush1.msra.mxu0 0.0
        %433 = vmatprep.subr.mxu0 0.0
        %434 = vmatpush1.msra.mxu0 0.0
        %435 = vmatprep.subr.mxu0 0.0
        %436 = vmatpush1.msra.mxu0 0.0
        %437 = vmatprep.subr.mxu0 0.0
        %438 = vmatpush1.msra.mxu0 0.0
        %439 = vmatprep.subr.mxu0 0.0
        %440 = vmatpush1.msra.mxu0 0.0
        %441 = vmatprep.subr.mxu0 0.0
        %442 = vmatpush1.msra.mxu0 0.0
        %443 = vmatprep.subr.mxu0 0.0
        %444 = vmatpush1.msra.mxu0 0.0
        %445 = vmatprep.subr.mxu0 0.0
        %446 = vmatpush1.msra.mxu0 0.0
        %447 = vmatprep.subr.mxu0 0.0
        %448 = vmatpush1.msra.mxu0 0.0
        %449 = vmatprep.subr.mxu0 0.0
        %450 = vmatpush1.msra.mxu0 0.0
        %451 = vmatprep.subr.mxu0 0.0
        %452 = vmatpush1.msra.mxu0 0.0
        %453 = vmatprep.subr.mxu0 0.0
        %454 = vmatpush1.msra.mxu0 0.0
        %455 = vmatprep.subr.mxu0 0.0
        %456 = vmatpush1.msra.mxu0 0.0
        %457 = vmatprep.subr.mxu0 0.0
        %458 = vmatpush1.msra.mxu0 0.0
        %459 = vmatprep.subr.mxu0 0.0
        %460 = vmatpush1.msra.mxu0 0.0
        %461 = vmatprep.subr.mxu0 0.0
        %462 = vmatpush1.msra.mxu0 0.0
        %463 = vmatprep.subr.mxu0 0.0
        %464 = vmatpush1.msra.mxu0 0.0
        %465 = vmatprep.subr.mxu0 0.0
        %466 = vmatpush1.msra.mxu0 0.0
        %467 = vmatprep.subr.mxu0 0.0
        %468 = vmatpush1.msra.mxu0 0.0
        %469 = vmatprep.subr.mxu0 0.0
        %470 = vmatpush1.msra.mxu0 0.0
        %471 = vmatprep.subr.mxu0 0.0
        %472 = vmatpush1.msra.mxu0 0.0
        %473 = vmatprep.subr.mxu0 0.0
        %474 = vmatpush1.msra.mxu0 0.0
        %475 = vmatprep.subr.mxu0 0.0
        %476 = vmatpush1.msra.mxu0 0.0
        %477 = vmatprep.mubr.f32.mxu0 0.0
        %478 = vmatmul.mubr.f32.gmra.mrb[0].mxu0 %v411
        %v479 = vpop.f32.mrb[0].mxu0
        %v480 = vadd.f32 0.0, %v479
        %v481 = vpop.f32.mrb[0].mxu0
        %v482 = vadd.f32 0.0, %v481
        %483 = vdwg.mxu0
        %v484 = vadd.f32 %v402, %v480
        %v485 = vadd.f32 %v404, %v482
        %486 = vrot.lane.b32.xlu0 %v170, 16
        %v487 = vpop.permute.xlu0 %486
        %489 = vrot.lane.b32.xlu0 %v169, 16
        %v490 = vpop.permute.xlu0 %489
        %v491 = vsel %vm237, %v490, %v487
        %v494 = vsel %vm237, %v487, %v490
        %495 = vrot.lane.b32.xlu0 %v169, 112
        %v496 = vpop.permute.xlu0 %495
        %497 = vrot.lane.b32.xlu0 %v170, 112
        %v498 = vpop.permute.xlu0 %497
        %v499 = vsel %vm246, %v496, %v498
        %v503 = vsel %vm246, %v498, %v496
        %v504 = vsel %vm202, %v499, %v494
        %v505 = vsel %vm203, %v503, %v491
        %s506 = scalar_lea.vmem %s1, 8
        %v507 = vld [vmem:[%s506] sm:$0xff]
        %v509 = vsel %vm257, %v507, 0
        %511 = vmatprep.subr.mxu0 %v505
        %512 = vmatpush1.msra.mxu0 %v504
        %513 = vmatprep.subr.mxu0 0.0
        %514 = vmatpush1.msra.mxu0 0.0
        %515 = vmatprep.subr.mxu0 0.0
        %516 = vmatpush1.msra.mxu0 0.0
        %517 = vmatprep.subr.mxu0 0.0
        %518 = vmatpush1.msra.mxu0 0.0
        %519 = vmatprep.subr.mxu0 0.0
        %520 = vmatpush1.msra.mxu0 0.0
        %521 = vmatprep.subr.mxu0 0.0
        %522 = vmatpush1.msra.mxu0 0.0
        %523 = vmatprep.subr.mxu0 0.0
        %524 = vmatpush1.msra.mxu0 0.0
        %525 = vmatprep.subr.mxu0 0.0
        %526 = vmatpush1.msra.mxu0 0.0
        %527 = vmatprep.subr.mxu0 0.0
        %528 = vmatpush1.msra.mxu0 0.0
        %529 = vmatprep.subr.mxu0 0.0
        %530 = vmatpush1.msra.mxu0 0.0
        %531 = vmatprep.subr.mxu0 0.0
        %532 = vmatpush1.msra.mxu0 0.0
        %533 = vmatprep.subr.mxu0 0.0
        %534 = vmatpush1.msra.mxu0 0.0
        %535 = vmatprep.subr.mxu0 0.0
        %536 = vmatpush1.msra.mxu0 0.0
        %537 = vmatprep.subr.mxu0 0.0
        %538 = vmatpush1.msra.mxu0 0.0
        %539 = vmatprep.subr.mxu0 0.0
        %540 = vmatpush1.msra.mxu0 0.0
        %541 = vmatprep.subr.mxu0 0.0
        %542 = vmatpush1.msra.mxu0 0.0
        %543 = vmatprep.subr.mxu0 0.0
        %544 = vmatpush1.msra.mxu0 0.0
        %545 = vmatprep.subr.mxu0 0.0
        %546 = vmatpush1.msra.mxu0 0.0
        %547 = vmatprep.subr.mxu0 0.0
        %548 = vmatpush1.msra.mxu0 0.0
        %549 = vmatprep.subr.mxu0 0.0
        %550 = vmatpush1.msra.mxu0 0.0
        %551 = vmatprep.subr.mxu0 0.0
        %552 = vmatpush1.msra.mxu0 0.0
        %553 = vmatprep.subr.mxu0 0.0
        %554 = vmatpush1.msra.mxu0 0.0
        %555 = vmatprep.subr.mxu0 0.0
        %556 = vmatpush1.msra.mxu0 0.0
        %557 = vmatprep.subr.mxu0 0.0
        %558 = vmatpush1.msra.mxu0 0.0
        %559 = vmatprep.subr.mxu0 0.0
        %560 = vmatpush1.msra.mxu0 0.0
        %561 = vmatprep.subr.mxu0 0.0
        %562 = vmatpush1.msra.mxu0 0.0
        %563 = vmatprep.subr.mxu0 0.0
        %564 = vmatpush1.msra.mxu0 0.0
        %565 = vmatprep.subr.mxu0 0.0
        %566 = vmatpush1.msra.mxu0 0.0
        %567 = vmatprep.subr.mxu0 0.0
        %568 = vmatpush1.msra.mxu0 0.0
        %569 = vmatprep.subr.mxu0 0.0
        %570 = vmatpush1.msra.mxu0 0.0
        %571 = vmatprep.subr.mxu0 0.0
        %572 = vmatpush1.msra.mxu0 0.0
        %573 = vmatprep.subr.mxu0 0.0
        %574 = vmatpush1.msra.mxu0 0.0
        %575 = vmatprep.mubr.f32.mxu0 0.0
        %576 = vmatmul.mubr.f32.gmra.mrb[0].mxu0 %v509
        %v577 = vpop.f32.mrb[0].mxu0
        %v578 = vadd.f32 0.0, %v577
        %v579 = vpop.f32.mrb[0].mxu0
        %v580 = vadd.f32 0.0, %v579
        %581 = vdwg.mxu0
        %v582 = vadd.f32 %v484, %v578
        %v583 = vadd.f32 %v485, %v580
        %s584 = scalar_lea.vmem %s1, 32
        %v585 = vld [vmem:[%s584] sm:$0xff]
        %v587 = vsel %vm257, %v585, 0
        %589 = vmatprep.subr.mxu0 %v170
        %590 = vmatpush1.msra.mxu0 %v169
        %591 = vmatprep.subr.mxu0 0.0
        %592 = vmatpush1.msra.mxu0 0.0
        %593 = vmatprep.subr.mxu0 0.0
        %594 = vmatpush1.msra.mxu0 0.0
        %595 = vmatprep.subr.mxu0 0.0
        %596 = vmatpush1.msra.mxu0 0.0
        %597 = vmatprep.subr.mxu0 0.0
        %598 = vmatpush1.msra.mxu0 0.0
        %599 = vmatprep.subr.mxu0 0.0
        %600 = vmatpush1.msra.mxu0 0.0
        %601 = vmatprep.subr.mxu0 0.0
        %602 = vmatpush1.msra.mxu0 0.0
        %603 = vmatprep.subr.mxu0 0.0
        %604 = vmatpush1.msra.mxu0 0.0
        %605 = vmatprep.subr.mxu0 0.0
        %606 = vmatpush1.msra.mxu0 0.0
        %607 = vmatprep.subr.mxu0 0.0
        %608 = vmatpush1.msra.mxu0 0.0
        %609 = vmatprep.subr.mxu0 0.0
        %610 = vmatpush1.msra.mxu0 0.0
        %611 = vmatprep.subr.mxu0 0.0
        %612 = vmatpush1.msra.mxu0 0.0
        %613 = vmatprep.subr.mxu0 0.0
        %614 = vmatpush1.msra.mxu0 0.0
        %615 = vmatprep.subr.mxu0 0.0
        %616 = vmatpush1.msra.mxu0 0.0
        %617 = vmatprep.subr.mxu0 0.0
        %618 = vmatpush1.msra.mxu0 0.0
        %619 = vmatprep.subr.mxu0 0.0
        %620 = vmatpush1.msra.mxu0 0.0
        %621 = vmatprep.subr.mxu0 0.0
        %622 = vmatpush1.msra.mxu0 0.0
        %623 = vmatprep.subr.mxu0 0.0
        %624 = vmatpush1.msra.mxu0 0.0
        %625 = vmatprep.subr.mxu0 0.0
        %626 = vmatpush1.msra.mxu0 0.0
        %627 = vmatprep.subr.mxu0 0.0
        %628 = vmatpush1.msra.mxu0 0.0
        %629 = vmatprep.subr.mxu0 0.0
        %630 = vmatpush1.msra.mxu0 0.0
        %631 = vmatprep.subr.mxu0 0.0
        %632 = vmatpush1.msra.mxu0 0.0
        %633 = vmatprep.subr.mxu0 0.0
        %634 = vmatpush1.msra.mxu0 0.0
        %635 = vmatprep.subr.mxu0 0.0
        %636 = vmatpush1.msra.mxu0 0.0
        %637 = vmatprep.subr.mxu0 0.0
        %638 = vmatpush1.msra.mxu0 0.0
        %639 = vmatprep.subr.mxu0 0.0
        %640 = vmatpush1.msra.mxu0 0.0
        %641 = vmatprep.subr.mxu0 0.0
        %642 = vmatpush1.msra.mxu0 0.0
        %643 = vmatprep.subr.mxu0 0.0
        %644 = vmatpush1.msra.mxu0 0.0
        %645 = vmatprep.subr.mxu0 0.0
        %646 = vmatpush1.msra.mxu0 0.0
        %647 = vmatprep.subr.mxu0 0.0
        %648 = vmatpush1.msra.mxu0 0.0
        %649 = vmatprep.subr.mxu0 0.0
        %650 = vmatpush1.msra.mxu0 0.0
        %651 = vmatprep.subr.mxu0 0.0
        %652 = vmatpush1.msra.mxu0 0.0
        %653 = vmatprep.mubr.f32.mxu0 0.0
        %654 = vmatmul.mubr.f32.gmra.mrb[0].mxu0 %v587
        %v655 = vpop.f32.mrb[0].mxu0
        %v656 = vadd.f32 0.0, %v655
        %v657 = vpop.f32.mrb[0].mxu0
        %v658 = vadd.f32 0.0, %v657
        %659 = vdwg.mxu0
        %v660 = vadd.f32 %v582, %v656
        %v661 = vadd.f32 %v583, %v658
        %v662 = vsel %vm204, %v494, %v499
        %v663 = vsel %vm205, %v491, %v503
        %s664 = scalar_lea.vmem %s1, 56
        %v665 = vld [vmem:[%s664] sm:$0xff]
        %v667 = vsel %vm257, %v665, 0
        %669 = vmatprep.subr.mxu0 %v663
        %670 = vmatpush1.msra.mxu0 %v662
        %671 = vmatprep.subr.mxu0 0.0
        %672 = vmatpush1.msra.mxu0 0.0
        %673 = vmatprep.subr.mxu0 0.0
        %674 = vmatpush1.msra.mxu0 0.0
        %675 = vmatprep.subr.mxu0 0.0
        %676 = vmatpush1.msra.mxu0 0.0
        %677 = vmatprep.subr.mxu0 0.0
        %678 = vmatpush1.msra.mxu0 0.0
        %679 = vmatprep.subr.mxu0 0.0
        %680 = vmatpush1.msra.mxu0 0.0
        %681 = vmatprep.subr.mxu0 0.0
        %682 = vmatpush1.msra.mxu0 0.0
        %683 = vmatprep.subr.mxu0 0.0
        %684 = vmatpush1.msra.mxu0 0.0
        %685 = vmatprep.subr.mxu0 0.0
        %686 = vmatpush1.msra.mxu0 0.0
        %687 = vmatprep.subr.mxu0 0.0
        %688 = vmatpush1.msra.mxu0 0.0
        %689 = vmatprep.subr.mxu0 0.0
        %690 = vmatpush1.msra.mxu0 0.0
        %691 = vmatprep.subr.mxu0 0.0
        %692 = vmatpush1.msra.mxu0 0.0
        %693 = vmatprep.subr.mxu0 0.0
        %694 = vmatpush1.msra.mxu0 0.0
        %695 = vmatprep.subr.mxu0 0.0
        %696 = vmatpush1.msra.mxu0 0.0
        %697 = vmatprep.subr.mxu0 0.0
        %698 = vmatpush1.msra.mxu0 0.0
        %699 = vmatprep.subr.mxu0 0.0
        %700 = vmatpush1.msra.mxu0 0.0
        %701 = vmatprep.subr.mxu0 0.0
        %702 = vmatpush1.msra.mxu0 0.0
        %703 = vmatprep.subr.mxu0 0.0
        %704 = vmatpush1.msra.mxu0 0.0
        %705 = vmatprep.subr.mxu0 0.0
        %706 = vmatpush1.msra.mxu0 0.0
        %707 = vmatprep.subr.mxu0 0.0
        %708 = vmatpush1.msra.mxu0 0.0
        %709 = vmatprep.subr.mxu0 0.0
        %710 = vmatpush1.msra.mxu0 0.0
        %711 = vmatprep.subr.mxu0 0.0
        %712 = vmatpush1.msra.mxu0 0.0
        %713 = vmatprep.subr.mxu0 0.0
        %714 = vmatpush1.msra.mxu0 0.0
        %715 = vmatprep.subr.mxu0 0.0
        %716 = vmatpush1.msra.mxu0 0.0
        %717 = vmatprep.subr.mxu0 0.0
        %718 = vmatpush1.msra.mxu0 0.0
        %719 = vmatprep.subr.mxu0 0.0
        %720 = vmatpush1.msra.mxu0 0.0
        %721 = vmatprep.subr.mxu0 0.0
        %722 = vmatpush1.msra.mxu0 0.0
        %723 = vmatprep.subr.mxu0 0.0
        %724 = vmatpush1.msra.mxu0 0.0
        %725 = vmatprep.subr.mxu0 0.0
        %726 = vmatpush1.msra.mxu0 0.0
        %727 = vmatprep.subr.mxu0 0.0
        %728 = vmatpush1.msra.mxu0 0.0
        %729 = vmatprep.subr.mxu0 0.0
        %730 = vmatpush1.msra.mxu0 0.0
        %731 = vmatprep.subr.mxu0 0.0
        %732 = vmatpush1.msra.mxu0 0.0
        %733 = vmatprep.mubr.f32.mxu0 0.0
        %734 = vmatmul.mubr.f32.gmra.mrb[0].mxu0 %v667
        %v735 = vpop.f32.mrb[0].mxu0
        %v736 = vadd.f32 0.0, %v735
        %v737 = vpop.f32.mrb[0].mxu0
        %v738 = vadd.f32 0.0, %v737
        %739 = vdwg.mxu0
        %v740 = vadd.f32 %v660, %v736
        %v741 = vadd.f32 %v661, %v738
        %v742 = vsel %vm200, %v217, %v223
        %v743 = vsel %vm201, %v214, %v227
        %745 = vrot.lane.b32.xlu0 %v743, 16
        %v746 = vpop.permute.xlu0 %745
        %749 = vrot.lane.b32.xlu0 %v742, 16
        %v750 = vpop.permute.xlu0 %749
        %v751 = vsel %vm237, %v750, %v746
        %v754 = vsel %vm237, %v746, %v750
        %755 = vrot.lane.b32.xlu0 %v742, 112
        %v756 = vpop.permute.xlu0 %755
        %757 = vrot.lane.b32.xlu0 %v743, 112
        %v758 = vpop.permute.xlu0 %757
        %v759 = vsel %vm246, %v756, %v758
        %v763 = vsel %vm246, %v758, %v756
        %v764 = vsel %vm202, %v759, %v754
        %v765 = vsel %vm203, %v763, %v751
        %s766 = scalar_lea.vmem %s1, 16
        %v767 = vld [vmem:[%s766] sm:$0xff]
        %v769 = vsel %vm257, %v767, 0
        %771 = vmatprep.subr.mxu0 %v765
        %772 = vmatpush1.msra.mxu0 %v764
        %773 = vmatprep.subr.mxu0 0.0
        %774 = vmatpush1.msra.mxu0 0.0
        %775 = vmatprep.subr.mxu0 0.0
        %776 = vmatpush1.msra.mxu0 0.0
        %777 = vmatprep.subr.mxu0 0.0
        %778 = vmatpush1.msra.mxu0 0.0
        %779 = vmatprep.subr.mxu0 0.0
        %780 = vmatpush1.msra.mxu0 0.0
        %781 = vmatprep.subr.mxu0 0.0
        %782 = vmatpush1.msra.mxu0 0.0
        %783 = vmatprep.subr.mxu0 0.0
        %784 = vmatpush1.msra.mxu0 0.0
        %785 = vmatprep.subr.mxu0 0.0
        %786 = vmatpush1.msra.mxu0 0.0
        %787 = vmatprep.subr.mxu0 0.0
        %788 = vmatpush1.msra.mxu0 0.0
        %789 = vmatprep.subr.mxu0 0.0
        %790 = vmatpush1.msra.mxu0 0.0
        %791 = vmatprep.subr.mxu0 0.0
        %792 = vmatpush1.msra.mxu0 0.0
        %793 = vmatprep.subr.mxu0 0.0
        %794 = vmatpush1.msra.mxu0 0.0
        %795 = vmatprep.subr.mxu0 0.0
        %796 = vmatpush1.msra.mxu0 0.0
        %797 = vmatprep.subr.mxu0 0.0
        %798 = vmatpush1.msra.mxu0 0.0
        %799 = vmatprep.subr.mxu0 0.0
        %800 = vmatpush1.msra.mxu0 0.0
        %801 = vmatprep.subr.mxu0 0.0
        %802 = vmatpush1.msra.mxu0 0.0
        %803 = vmatprep.subr.mxu0 0.0
        %804 = vmatpush1.msra.mxu0 0.0
        %805 = vmatprep.subr.mxu0 0.0
        %806 = vmatpush1.msra.mxu0 0.0
        %807 = vmatprep.subr.mxu0 0.0
        %808 = vmatpush1.msra.mxu0 0.0
        %809 = vmatprep.subr.mxu0 0.0
        %810 = vmatpush1.msra.mxu0 0.0
        %811 = vmatprep.subr.mxu0 0.0
        %812 = vmatpush1.msra.mxu0 0.0
        %813 = vmatprep.subr.mxu0 0.0
        %814 = vmatpush1.msra.mxu0 0.0
        %815 = vmatprep.subr.mxu0 0.0
        %816 = vmatpush1.msra.mxu0 0.0
        %817 = vmatprep.subr.mxu0 0.0
        %818 = vmatpush1.msra.mxu0 0.0
        %819 = vmatprep.subr.mxu0 0.0
        %820 = vmatpush1.msra.mxu0 0.0
        %821 = vmatprep.subr.mxu0 0.0
        %822 = vmatpush1.msra.mxu0 0.0
        %823 = vmatprep.subr.mxu0 0.0
        %824 = vmatpush1.msra.mxu0 0.0
        %825 = vmatprep.subr.mxu0 0.0
        %826 = vmatpush1.msra.mxu0 0.0
        %827 = vmatprep.subr.mxu0 0.0
        %828 = vmatpush1.msra.mxu0 0.0
        %829 = vmatprep.subr.mxu0 0.0
        %830 = vmatpush1.msra.mxu0 0.0
        %831 = vmatprep.subr.mxu0 0.0
        %832 = vmatpush1.msra.mxu0 0.0
        %833 = vmatprep.subr.mxu0 0.0
        %834 = vmatpush1.msra.mxu0 0.0
        %835 = vmatprep.mubr.f32.mxu0 0.0
        %836 = vmatmul.mubr.f32.gmra.mrb[0].mxu0 %v769
        %v837 = vpop.f32.mrb[0].mxu0
        %v838 = vadd.f32 0.0, %v837
        %v839 = vpop.f32.mrb[0].mxu0
        %v840 = vadd.f32 0.0, %v839
        %841 = vdwg.mxu0
        %v842 = vadd.f32 %v740, %v838
        %v843 = vadd.f32 %v741, %v840
        %s844 = scalar_lea.vmem %s1, 40
        %v845 = vld [vmem:[%s844] sm:$0xff]
        %v847 = vsel %vm257, %v845, 0
        %849 = vmatprep.subr.mxu0 %v743
        %850 = vmatpush1.msra.mxu0 %v742
        %851 = vmatprep.subr.mxu0 0.0
        %852 = vmatpush1.msra.mxu0 0.0
        %853 = vmatprep.subr.mxu0 0.0
        %854 = vmatpush1.msra.mxu0 0.0
        %855 = vmatprep.subr.mxu0 0.0
        %856 = vmatpush1.msra.mxu0 0.0
        %857 = vmatprep.subr.mxu0 0.0
        %858 = vmatpush1.msra.mxu0 0.0
        %859 = vmatprep.subr.mxu0 0.0
        %860 = vmatpush1.msra.mxu0 0.0
        %861 = vmatprep.subr.mxu0 0.0
        %862 = vmatpush1.msra.mxu0 0.0
        %863 = vmatprep.subr.mxu0 0.0
        %864 = vmatpush1.msra.mxu0 0.0
        %865 = vmatprep.subr.mxu0 0.0
        %866 = vmatpush1.msra.mxu0 0.0
        %867 = vmatprep.subr.mxu0 0.0
        %868 = vmatpush1.msra.mxu0 0.0
        %869 = vmatprep.subr.mxu0 0.0
        %870 = vmatpush1.msra.mxu0 0.0
        %871 = vmatprep.subr.mxu0 0.0
        %872 = vmatpush1.msra.mxu0 0.0
        %873 = vmatprep.subr.mxu0 0.0
        %874 = vmatpush1.msra.mxu0 0.0
        %875 = vmatprep.subr.mxu0 0.0
        %876 = vmatpush1.msra.mxu0 0.0
        %877 = vmatprep.subr.mxu0 0.0
        %878 = vmatpush1.msra.mxu0 0.0
        %879 = vmatprep.subr.mxu0 0.0
        %880 = vmatpush1.msra.mxu0 0.0
        %881 = vmatprep.subr.mxu0 0.0
        %882 = vmatpush1.msra.mxu0 0.0
        %883 = vmatprep.subr.mxu0 0.0
        %884 = vmatpush1.msra.mxu0 0.0
        %885 = vmatprep.subr.mxu0 0.0
        %886 = vmatpush1.msra.mxu0 0.0
        %887 = vmatprep.subr.mxu0 0.0
        %888 = vmatpush1.msra.mxu0 0.0
        %889 = vmatprep.subr.mxu0 0.0
        %890 = vmatpush1.msra.mxu0 0.0
        %891 = vmatprep.subr.mxu0 0.0
        %892 = vmatpush1.msra.mxu0 0.0
        %893 = vmatprep.subr.mxu0 0.0
        %894 = vmatpush1.msra.mxu0 0.0
        %895 = vmatprep.subr.mxu0 0.0
        %896 = vmatpush1.msra.mxu0 0.0
        %897 = vmatprep.subr.mxu0 0.0
        %898 = vmatpush1.msra.mxu0 0.0
        %899 = vmatprep.subr.mxu0 0.0
        %900 = vmatpush1.msra.mxu0 0.0
        %901 = vmatprep.subr.mxu0 0.0
        %902 = vmatpush1.msra.mxu0 0.0
        %903 = vmatprep.subr.mxu0 0.0
        %904 = vmatpush1.msra.mxu0 0.0
        %905 = vmatprep.subr.mxu0 0.0
        %906 = vmatpush1.msra.mxu0 0.0
        %907 = vmatprep.subr.mxu0 0.0
        %908 = vmatpush1.msra.mxu0 0.0
        %909 = vmatprep.subr.mxu0 0.0
        %910 = vmatpush1.msra.mxu0 0.0
        %911 = vmatprep.subr.mxu0 0.0
        %912 = vmatpush1.msra.mxu0 0.0
        %913 = vmatprep.mubr.f32.mxu0 0.0
        %914 = vmatmul.mubr.f32.gmra.mrb[0].mxu0 %v847
        %v915 = vpop.f32.mrb[0].mxu0
        %v916 = vadd.f32 0.0, %v915
        %v917 = vpop.f32.mrb[0].mxu0
        %v918 = vadd.f32 0.0, %v917
        %919 = vdwg.mxu0
        %v920 = vadd.f32 %v842, %v916
        %v921 = vadd.f32 %v843, %v918
        %v922 = vsel %vm204, %v754, %v759
        %v923 = vsel %vm205, %v751, %v763
        %s924 = scalar_lea.vmem %s1, 64
        %v925 = vld [vmem:[%s924] sm:$0xff]
        %v927 = vsel %vm257, %v925, 0
        %929 = vmatprep.subr.mxu0 %v923
        %930 = vmatpush1.msra.mxu0 %v922
        %931 = vmatprep.subr.mxu0 0.0
        %932 = vmatpush1.msra.mxu0 0.0
        %933 = vmatprep.subr.mxu0 0.0
        %934 = vmatpush1.msra.mxu0 0.0
        %935 = vmatprep.subr.mxu0 0.0
        %936 = vmatpush1.msra.mxu0 0.0
        %937 = vmatprep.subr.mxu0 0.0
        %938 = vmatpush1.msra.mxu0 0.0
        %939 = vmatprep.subr.mxu0 0.0
        %940 = vmatpush1.msra.mxu0 0.0
        %941 = vmatprep.subr.mxu0 0.0
        %942 = vmatpush1.msra.mxu0 0.0
        %943 = vmatprep.subr.mxu0 0.0
        %944 = vmatpush1.msra.mxu0 0.0
        %945 = vmatprep.subr.mxu0 0.0
        %946 = vmatpush1.msra.mxu0 0.0
        %947 = vmatprep.subr.mxu0 0.0
        %948 = vmatpush1.msra.mxu0 0.0
        %949 = vmatprep.subr.mxu0 0.0
        %950 = vmatpush1.msra.mxu0 0.0
        %951 = vmatprep.subr.mxu0 0.0
        %952 = vmatpush1.msra.mxu0 0.0
        %953 = vmatprep.subr.mxu0 0.0
        %954 = vmatpush1.msra.mxu0 0.0
        %955 = vmatprep.subr.mxu0 0.0
        %956 = vmatpush1.msra.mxu0 0.0
        %957 = vmatprep.subr.mxu0 0.0
        %958 = vmatpush1.msra.mxu0 0.0
        %959 = vmatprep.subr.mxu0 0.0
        %960 = vmatpush1.msra.mxu0 0.0
        %961 = vmatprep.subr.mxu0 0.0
        %962 = vmatpush1.msra.mxu0 0.0
        %963 = vmatprep.subr.mxu0 0.0
        %964 = vmatpush1.msra.mxu0 0.0
        %965 = vmatprep.subr.mxu0 0.0
        %966 = vmatpush1.msra.mxu0 0.0
        %967 = vmatprep.subr.mxu0 0.0
        %968 = vmatpush1.msra.mxu0 0.0
        %969 = vmatprep.subr.mxu0 0.0
        %970 = vmatpush1.msra.mxu0 0.0
        %971 = vmatprep.subr.mxu0 0.0
        %972 = vmatpush1.msra.mxu0 0.0
        %973 = vmatprep.subr.mxu0 0.0
        %974 = vmatpush1.msra.mxu0 0.0
        %975 = vmatprep.subr.mxu0 0.0
        %976 = vmatpush1.msra.mxu0 0.0
        %977 = vmatprep.subr.mxu0 0.0
        %978 = vmatpush1.msra.mxu0 0.0
        %979 = vmatprep.subr.mxu0 0.0
        %980 = vmatpush1.msra.mxu0 0.0
        %981 = vmatprep.subr.mxu0 0.0
        %982 = vmatpush1.msra.mxu0 0.0
        %983 = vmatprep.subr.mxu0 0.0
        %984 = vmatpush1.msra.mxu0 0.0
        %985 = vmatprep.subr.mxu0 0.0
        %986 = vmatpush1.msra.mxu0 0.0
        %987 = vmatprep.subr.mxu0 0.0
        %988 = vmatpush1.msra.mxu0 0.0
        %989 = vmatprep.subr.mxu0 0.0
        %990 = vmatpush1.msra.mxu0 0.0
        %991 = vmatprep.subr.mxu0 0.0
        %992 = vmatpush1.msra.mxu0 0.0
        %993 = vmatprep.mubr.f32.mxu0 0.0
        %994 = vmatmul.mubr.f32.gmra.mrb[0].mxu0 %v927
        %v995 = vpop.f32.mrb[0].mxu0
        %v996 = vadd.f32 0.0, %v995
        %v997 = vpop.f32.mrb[0].mxu0
        %v998 = vadd.f32 0.0, %v997
        %999 = vdwg.mxu0
        %v1000 = vadd.f32 %v920, %v996
        %v1001 = vadd.f32 %v921, %v998
        %v1002 = vadd.f32 %v1000, %v1001
        %1003 = vadd.xlane.f32.xlu0 %v1002
        %v1004 = vpop.xlane.xlu0 %1003
        %v1005 = vmul.f32 %v1004, 0.00390625
        %v1006 = vsub.f32 %v1000, %v1005
        %v1007 = vsub.f32 %v1001, %v1005
        %v1008 = vmul.f32 %v1006, %v1006
        %v1009 = vmul.f32 %v1007, %v1007
        %v1010 = vadd.f32 %v1008, %v1009
        %1011 = vadd.xlane.f32.xlu0 %v1010
        %v1012 = vpop.xlane.xlu0 %1011
        %v1013 = vmul.f32 %v1012, 0.00390625
        %v1014 = vadd.f32 %v1013, 1e-05
        %v1015 = vrsqrt.pop %v1014
        %v1016 = vmul.f32 %v1006, %v1015
        %v1017 = vmul.f32 %v1007, %v1015
        %v1018 = vmax.f32 %v1016, 0.0
        %v1019 = vmax.f32 %v1017, 0.0
        %1021 = vrot.lane.b32.xlu0 %v1019, 1
        %v1022 = vpop.permute.xlu0 %1021
        %1025 = vrot.lane.b32.xlu0 %v1018, 1
        %v1026 = vpop.permute.xlu0 %1025
        %v1027 = vsel %vm213, %v1026, %v1022
        %v1030 = vsel %vm213, %v1022, %v1026
        %1031 = vrot.lane.b32.xlu0 %v1018, 127
        %v1032 = vpop.permute.xlu0 %1031
        %1033 = vrot.lane.b32.xlu0 %v1019, 127
        %v1034 = vpop.permute.xlu0 %1033
        %v1035 = vsel %vm222, %v1032, %v1034
        %v1039 = vsel %vm222, %v1034, %v1032
        %v1040 = vsel %vm198, %v1035, %v1030
        %v1041 = vsel %vm199, %v1039, %v1027
        %1043 = vrot.lane.b32.xlu0 %v1041, 16
        %v1044 = vpop.permute.xlu0 %1043
        %1047 = vrot.lane.b32.xlu0 %v1040, 16
        %v1048 = vpop.permute.xlu0 %1047
        %v1049 = vsel %vm237, %v1048, %v1044
        %v1052 = vsel %vm237, %v1044, %v1048
        %1053 = vrot.lane.b32.xlu0 %v1040, 112
        %v1054 = vpop.permute.xlu0 %1053
        %1055 = vrot.lane.b32.xlu0 %v1041, 112
        %v1056 = vpop.permute.xlu0 %1055
        %v1057 = vsel %vm246, %v1054, %v1056
        %v1061 = vsel %vm246, %v1056, %v1054
        %v1062 = vsel %vm202, %v1057, %v1052
        %v1063 = vsel %vm203, %v1061, %v1049
        %v1064 = vld [vmem:[%s2] sm:$0xff]
        %s1065 = scalar_lea.vmem %s2, 24
        %v1066 = vld [vmem:[%s1065] sm:$0xff]
        %v1068 = vsel %vm257, %v1066, 0
        %1070 = vmatprep.subr.mxu0 %v1041
        %1071 = vmatpush1.msra.mxu0 %v1040
        %1072 = vmatprep.subr.mxu0 0.0
        %1073 = vmatpush1.msra.mxu0 0.0
        %1074 = vmatprep.subr.mxu0 0.0
        %1075 = vmatpush1.msra.mxu0 0.0
        %1076 = vmatprep.subr.mxu0 0.0
        %1077 = vmatpush1.msra.mxu0 0.0
        %1078 = vmatprep.subr.mxu0 0.0
        %1079 = vmatpush1.msra.mxu0 0.0
        %1080 = vmatprep.subr.mxu0 0.0
        %1081 = vmatpush1.msra.mxu0 0.0
        %1082 = vmatprep.subr.mxu0 0.0
        %1083 = vmatpush1.msra.mxu0 0.0
        %1084 = vmatprep.subr.mxu0 0.0
        %1085 = vmatpush1.msra.mxu0 0.0
        %1086 = vmatprep.subr.mxu0 0.0
        %1087 = vmatpush1.msra.mxu0 0.0
        %1088 = vmatprep.subr.mxu0 0.0
        %1089 = vmatpush1.msra.mxu0 0.0
        %1090 = vmatprep.subr.mxu0 0.0
        %1091 = vmatpush1.msra.mxu0 0.0
        %1092 = vmatprep.subr.mxu0 0.0
        %1093 = vmatpush1.msra.mxu0 0.0
        %1094 = vmatprep.subr.mxu0 0.0
        %1095 = vmatpush1.msra.mxu0 0.0
        %1096 = vmatprep.subr.mxu0 0.0
        %1097 = vmatpush1.msra.mxu0 0.0
        %1098 = vmatprep.subr.mxu0 0.0
        %1099 = vmatpush1.msra.mxu0 0.0
        %1100 = vmatprep.subr.mxu0 0.0
        %1101 = vmatpush1.msra.mxu0 0.0
        %1102 = vmatprep.subr.mxu0 0.0
        %1103 = vmatpush1.msra.mxu0 0.0
        %1104 = vmatprep.subr.mxu0 0.0
        %1105 = vmatpush1.msra.mxu0 0.0
        %1106 = vmatprep.subr.mxu0 0.0
        %1107 = vmatpush1.msra.mxu0 0.0
        %1108 = vmatprep.subr.mxu0 0.0
        %1109 = vmatpush1.msra.mxu0 0.0
        %1110 = vmatprep.subr.mxu0 0.0
        %1111 = vmatpush1.msra.mxu0 0.0
        %1112 = vmatprep.subr.mxu0 0.0
        %1113 = vmatpush1.msra.mxu0 0.0
        %1114 = vmatprep.subr.mxu0 0.0
        %1115 = vmatpush1.msra.mxu0 0.0
        %1116 = vmatprep.subr.mxu0 0.0
        %1117 = vmatpush1.msra.mxu0 0.0
        %1118 = vmatprep.subr.mxu0 0.0
        %1119 = vmatpush1.msra.mxu0 0.0
        %1120 = vmatprep.subr.mxu0 0.0
        %1121 = vmatpush1.msra.mxu0 0.0
        %1122 = vmatprep.subr.mxu0 0.0
        %1123 = vmatpush1.msra.mxu0 0.0
        %1124 = vmatprep.subr.mxu0 0.0
        %1125 = vmatpush1.msra.mxu0 0.0
        %1126 = vmatprep.subr.mxu0 0.0
        %1127 = vmatpush1.msra.mxu0 0.0
        %1128 = vmatprep.subr.mxu0 0.0
        %1129 = vmatpush1.msra.mxu0 0.0
        %1130 = vmatprep.subr.mxu0 0.0
        %1131 = vmatpush1.msra.mxu0 0.0
        %1132 = vmatprep.subr.mxu0 0.0
        %1133 = vmatpush1.msra.mxu0 0.0
        %1134 = vmatprep.mubr.f32.mxu0 0.0
        %1135 = vmatmul.mubr.f32.gmra.mrb[0].mxu0 %v1068
        %v1136 = vpop.f32.mrb[0].mxu0
        %v1137 = vadd.f32 0.0, %v1136
        %v1138 = vpop.f32.mrb[0].mxu0
        %v1139 = vadd.f32 0.0, %v1138
        %1140 = vdwg.mxu0
        %v1142 = vsel %vm257, %v1064, 0
        %1144 = vmatprep.subr.mxu0 %v1063
        %1145 = vmatpush1.msra.mxu0 %v1062
        %1146 = vmatprep.subr.mxu0 0.0
        %1147 = vmatpush1.msra.mxu0 0.0
        %1148 = vmatprep.subr.mxu0 0.0
        %1149 = vmatpush1.msra.mxu0 0.0
        %1150 = vmatprep.subr.mxu0 0.0
        %1151 = vmatpush1.msra.mxu0 0.0
        %1152 = vmatprep.subr.mxu0 0.0
        %1153 = vmatpush1.msra.mxu0 0.0
        %1154 = vmatprep.subr.mxu0 0.0
        %1155 = vmatpush1.msra.mxu0 0.0
        %1156 = vmatprep.subr.mxu0 0.0
        %1157 = vmatpush1.msra.mxu0 0.0
        %1158 = vmatprep.subr.mxu0 0.0
        %1159 = vmatpush1.msra.mxu0 0.0
        %1160 = vmatprep.subr.mxu0 0.0
        %1161 = vmatpush1.msra.mxu0 0.0
        %1162 = vmatprep.subr.mxu0 0.0
        %1163 = vmatpush1.msra.mxu0 0.0
        %1164 = vmatprep.subr.mxu0 0.0
        %1165 = vmatpush1.msra.mxu0 0.0
        %1166 = vmatprep.subr.mxu0 0.0
        %1167 = vmatpush1.msra.mxu0 0.0
        %1168 = vmatprep.subr.mxu0 0.0
        %1169 = vmatpush1.msra.mxu0 0.0
        %1170 = vmatprep.subr.mxu0 0.0
        %1171 = vmatpush1.msra.mxu0 0.0
        %1172 = vmatprep.subr.mxu0 0.0
        %1173 = vmatpush1.msra.mxu0 0.0
        %1174 = vmatprep.subr.mxu0 0.0
        %1175 = vmatpush1.msra.mxu0 0.0
        %1176 = vmatprep.subr.mxu0 0.0
        %1177 = vmatpush1.msra.mxu0 0.0
        %1178 = vmatprep.subr.mxu0 0.0
        %1179 = vmatpush1.msra.mxu0 0.0
        %1180 = vmatprep.subr.mxu0 0.0
        %1181 = vmatpush1.msra.mxu0 0.0
        %1182 = vmatprep.subr.mxu0 0.0
        %1183 = vmatpush1.msra.mxu0 0.0
        %1184 = vmatprep.subr.mxu0 0.0
        %1185 = vmatpush1.msra.mxu0 0.0
        %1186 = vmatprep.subr.mxu0 0.0
        %1187 = vmatpush1.msra.mxu0 0.0
        %1188 = vmatprep.subr.mxu0 0.0
        %1189 = vmatpush1.msra.mxu0 0.0
        %1190 = vmatprep.subr.mxu0 0.0
        %1191 = vmatpush1.msra.mxu0 0.0
        %1192 = vmatprep.subr.mxu0 0.0
        %1193 = vmatpush1.msra.mxu0 0.0
        %1194 = vmatprep.subr.mxu0 0.0
        %1195 = vmatpush1.msra.mxu0 0.0
        %1196 = vmatprep.subr.mxu0 0.0
        %1197 = vmatpush1.msra.mxu0 0.0
        %1198 = vmatprep.subr.mxu0 0.0
        %1199 = vmatpush1.msra.mxu0 0.0
        %1200 = vmatprep.subr.mxu0 0.0
        %1201 = vmatpush1.msra.mxu0 0.0
        %1202 = vmatprep.subr.mxu0 0.0
        %1203 = vmatpush1.msra.mxu0 0.0
        %1204 = vmatprep.subr.mxu0 0.0
        %1205 = vmatpush1.msra.mxu0 0.0
        %1206 = vmatprep.subr.mxu0 0.0
        %1207 = vmatpush1.msra.mxu0 0.0
        %1208 = vmatprep.mubr.f32.mxu0 0.0
        %1209 = vmatmul.mubr.f32.gmra.mrb[0].mxu0 %v1142
        %v1210 = vpop.f32.mrb[0].mxu0
        %v1211 = vadd.f32 %v1137, %v1210
        %v1212 = vpop.f32.mrb[0].mxu0
        %v1213 = vadd.f32 %v1139, %v1212
        %1214 = vdwg.mxu0
        %v1215 = vsel %vm204, %v1052, %v1057
        %v1216 = vsel %vm205, %v1049, %v1061
        %s1217 = scalar_lea.vmem %s2, 48
        %v1218 = vld [vmem:[%s1217] sm:$0xff]
        %v1220 = vsel %vm257, %v1218, 0
        %1222 = vmatprep.subr.mxu0 %v1216
        %1223 = vmatpush1.msra.mxu0 %v1215
        %1224 = vmatprep.subr.mxu0 0.0
        %1225 = vmatpush1.msra.mxu0 0.0
        %1226 = vmatprep.subr.mxu0 0.0
        %1227 = vmatpush1.msra.mxu0 0.0
        %1228 = vmatprep.subr.mxu0 0.0
        %1229 = vmatpush1.msra.mxu0 0.0
        %1230 = vmatprep.subr.mxu0 0.0
        %1231 = vmatpush1.msra.mxu0 0.0
        %1232 = vmatprep.subr.mxu0 0.0
        %1233 = vmatpush1.msra.mxu0 0.0
        %1234 = vmatprep.subr.mxu0 0.0
        %1235 = vmatpush1.msra.mxu0 0.0
        %1236 = vmatprep.subr.mxu0 0.0
        %1237 = vmatpush1.msra.mxu0 0.0
        %1238 = vmatprep.subr.mxu0 0.0
        %1239 = vmatpush1.msra.mxu0 0.0
        %1240 = vmatprep.subr.mxu0 0.0
        %1241 = vmatpush1.msra.mxu0 0.0
        %1242 = vmatprep.subr.mxu0 0.0
        %1243 = vmatpush1.msra.mxu0 0.0
        %1244 = vmatprep.subr.mxu0 0.0
        %1245 = vmatpush1.msra.mxu0 0.0
        %1246 = vmatprep.subr.mxu0 0.0
        %1247 = vmatpush1.msra.mxu0 0.0
        %1248 = vmatprep.subr.mxu0 0.0
        %1249 = vmatpush1.msra.mxu0 0.0
        %1250 = vmatprep.subr.mxu0 0.0
        %1251 = vmatpush1.msra.mxu0 0.0
        %1252 = vmatprep.subr.mxu0 0.0
        %1253 = vmatpush1.msra.mxu0 0.0
        %1254 = vmatprep.subr.mxu0 0.0
        %1255 = vmatpush1.msra.mxu0 0.0
        %1256 = vmatprep.subr.mxu0 0.0
        %1257 = vmatpush1.msra.mxu0 0.0
        %1258 = vmatprep.subr.mxu0 0.0
        %1259 = vmatpush1.msra.mxu0 0.0
        %1260 = vmatprep.subr.mxu0 0.0
        %1261 = vmatpush1.msra.mxu0 0.0
        %1262 = vmatprep.subr.mxu0 0.0
        %1263 = vmatpush1.msra.mxu0 0.0
        %1264 = vmatprep.subr.mxu0 0.0
        %1265 = vmatpush1.msra.mxu0 0.0
        %1266 = vmatprep.subr.mxu0 0.0
        %1267 = vmatpush1.msra.mxu0 0.0
        %1268 = vmatprep.subr.mxu0 0.0
        %1269 = vmatpush1.msra.mxu0 0.0
        %1270 = vmatprep.subr.mxu0 0.0
        %1271 = vmatpush1.msra.mxu0 0.0
        %1272 = vmatprep.subr.mxu0 0.0
        %1273 = vmatpush1.msra.mxu0 0.0
        %1274 = vmatprep.subr.mxu0 0.0
        %1275 = vmatpush1.msra.mxu0 0.0
        %1276 = vmatprep.subr.mxu0 0.0
        %1277 = vmatpush1.msra.mxu0 0.0
        %1278 = vmatprep.subr.mxu0 0.0
        %1279 = vmatpush1.msra.mxu0 0.0
        %1280 = vmatprep.subr.mxu0 0.0
        %1281 = vmatpush1.msra.mxu0 0.0
        %1282 = vmatprep.subr.mxu0 0.0
        %1283 = vmatpush1.msra.mxu0 0.0
        %1284 = vmatprep.subr.mxu0 0.0
        %1285 = vmatpush1.msra.mxu0 0.0
        %1286 = vmatprep.mubr.f32.mxu0 0.0
        %1287 = vmatmul.mubr.f32.gmra.mrb[0].mxu0 %v1220
        %v1288 = vpop.f32.mrb[0].mxu0
        %v1289 = vadd.f32 0.0, %v1288
        %v1290 = vpop.f32.mrb[0].mxu0
        %v1291 = vadd.f32 0.0, %v1290
        %1292 = vdwg.mxu0
        %v1293 = vadd.f32 %v1211, %v1289
        %v1294 = vadd.f32 %v1213, %v1291
        %1295 = vrot.lane.b32.xlu0 %v1019, 16
        %v1296 = vpop.permute.xlu0 %1295
        %1298 = vrot.lane.b32.xlu0 %v1018, 16
        %v1299 = vpop.permute.xlu0 %1298
        %v1300 = vsel %vm237, %v1299, %v1296
        %v1303 = vsel %vm237, %v1296, %v1299
        %1304 = vrot.lane.b32.xlu0 %v1018, 112
        %v1305 = vpop.permute.xlu0 %1304
        %1306 = vrot.lane.b32.xlu0 %v1019, 112
        %v1307 = vpop.permute.xlu0 %1306
        %v1308 = vsel %vm246, %v1305, %v1307
        %v1312 = vsel %vm246, %v1307, %v1305
        %v1313 = vsel %vm202, %v1308, %v1303
        %v1314 = vsel %vm203, %v1312, %v1300
        %s1315 = scalar_lea.vmem %s2, 8
        %v1316 = vld [vmem:[%s1315] sm:$0xff]
        %v1318 = vsel %vm257, %v1316, 0
        %1320 = vmatprep.subr.mxu0 %v1314
        %1321 = vmatpush1.msra.mxu0 %v1313
        %1322 = vmatprep.subr.mxu0 0.0
        %1323 = vmatpush1.msra.mxu0 0.0
        %1324 = vmatprep.subr.mxu0 0.0
        %1325 = vmatpush1.msra.mxu0 0.0
        %1326 = vmatprep.subr.mxu0 0.0
        %1327 = vmatpush1.msra.mxu0 0.0
        %1328 = vmatprep.subr.mxu0 0.0
        %1329 = vmatpush1.msra.mxu0 0.0
        %1330 = vmatprep.subr.mxu0 0.0
        %1331 = vmatpush1.msra.mxu0 0.0
        %1332 = vmatprep.subr.mxu0 0.0
        %1333 = vmatpush1.msra.mxu0 0.0
        %1334 = vmatprep.subr.mxu0 0.0
        %1335 = vmatpush1.msra.mxu0 0.0
        %1336 = vmatprep.subr.mxu0 0.0
        %1337 = vmatpush1.msra.mxu0 0.0
        %1338 = vmatprep.subr.mxu0 0.0
        %1339 = vmatpush1.msra.mxu0 0.0
        %1340 = vmatprep.subr.mxu0 0.0
        %1341 = vmatpush1.msra.mxu0 0.0
        %1342 = vmatprep.subr.mxu0 0.0
        %1343 = vmatpush1.msra.mxu0 0.0
        %1344 = vmatprep.subr.mxu0 0.0
        %1345 = vmatpush1.msra.mxu0 0.0
        %1346 = vmatprep.subr.mxu0 0.0
        %1347 = vmatpush1.msra.mxu0 0.0
        %1348 = vmatprep.subr.mxu0 0.0
        %1349 = vmatpush1.msra.mxu0 0.0
        %1350 = vmatprep.subr.mxu0 0.0
        %1351 = vmatpush1.msra.mxu0 0.0
        %1352 = vmatprep.subr.mxu0 0.0
        %1353 = vmatpush1.msra.mxu0 0.0
        %1354 = vmatprep.subr.mxu0 0.0
        %1355 = vmatpush1.msra.mxu0 0.0
        %1356 = vmatprep.subr.mxu0 0.0
        %1357 = vmatpush1.msra.mxu0 0.0
        %1358 = vmatprep.subr.mxu0 0.0
        %1359 = vmatpush1.msra.mxu0 0.0
        %1360 = vmatprep.subr.mxu0 0.0
        %1361 = vmatpush1.msra.mxu0 0.0
        %1362 = vmatprep.subr.mxu0 0.0
        %1363 = vmatpush1.msra.mxu0 0.0
        %1364 = vmatprep.subr.mxu0 0.0
        %1365 = vmatpush1.msra.mxu0 0.0
        %1366 = vmatprep.subr.mxu0 0.0
        %1367 = vmatpush1.msra.mxu0 0.0
        %1368 = vmatprep.subr.mxu0 0.0
        %1369 = vmatpush1.msra.mxu0 0.0
        %1370 = vmatprep.subr.mxu0 0.0
        %1371 = vmatpush1.msra.mxu0 0.0
        %1372 = vmatprep.subr.mxu0 0.0
        %1373 = vmatpush1.msra.mxu0 0.0
        %1374 = vmatprep.subr.mxu0 0.0
        %1375 = vmatpush1.msra.mxu0 0.0
        %1376 = vmatprep.subr.mxu0 0.0
        %1377 = vmatpush1.msra.mxu0 0.0
        %1378 = vmatprep.subr.mxu0 0.0
        %1379 = vmatpush1.msra.mxu0 0.0
        %1380 = vmatprep.subr.mxu0 0.0
        %1381 = vmatpush1.msra.mxu0 0.0
        %1382 = vmatprep.subr.mxu0 0.0
        %1383 = vmatpush1.msra.mxu0 0.0
        %1384 = vmatprep.mubr.f32.mxu0 0.0
        %1385 = vmatmul.mubr.f32.gmra.mrb[0].mxu0 %v1318
        %v1386 = vpop.f32.mrb[0].mxu0
        %v1387 = vadd.f32 0.0, %v1386
        %v1388 = vpop.f32.mrb[0].mxu0
        %v1389 = vadd.f32 0.0, %v1388
        %1390 = vdwg.mxu0
        %v1391 = vadd.f32 %v1293, %v1387
        %v1392 = vadd.f32 %v1294, %v1389
        %s1393 = scalar_lea.vmem %s2, 32
        %v1394 = vld [vmem:[%s1393] sm:$0xff]
        %v1396 = vsel %vm257, %v1394, 0
        %1398 = vmatprep.subr.mxu0 %v1019
        %1399 = vmatpush1.msra.mxu0 %v1018
        %1400 = vmatprep.subr.mxu0 0.0
        %1401 = vmatpush1.msra.mxu0 0.0
        %1402 = vmatprep.subr.mxu0 0.0
        %1403 = vmatpush1.msra.mxu0 0.0
        %1404 = vmatprep.subr.mxu0 0.0
        %1405 = vmatpush1.msra.mxu0 0.0
        %1406 = vmatprep.subr.mxu0 0.0
        %1407 = vmatpush1.msra.mxu0 0.0
        %1408 = vmatprep.subr.mxu0 0.0
        %1409 = vmatpush1.msra.mxu0 0.0
        %1410 = vmatprep.subr.mxu0 0.0
        %1411 = vmatpush1.msra.mxu0 0.0
        %1412 = vmatprep.subr.mxu0 0.0
        %1413 = vmatpush1.msra.mxu0 0.0
        %1414 = vmatprep.subr.mxu0 0.0
        %1415 = vmatpush1.msra.mxu0 0.0
        %1416 = vmatprep.subr.mxu0 0.0
        %1417 = vmatpush1.msra.mxu0 0.0
        %1418 = vmatprep.subr.mxu0 0.0
        %1419 = vmatpush1.msra.mxu0 0.0
        %1420 = vmatprep.subr.mxu0 0.0
        %1421 = vmatpush1.msra.mxu0 0.0
        %1422 = vmatprep.subr.mxu0 0.0
        %1423 = vmatpush1.msra.mxu0 0.0
        %1424 = vmatprep.subr.mxu0 0.0
        %1425 = vmatpush1.msra.mxu0 0.0
        %1426 = vmatprep.subr.mxu0 0.0
        %1427 = vmatpush1.msra.mxu0 0.0
        %1428 = vmatprep.subr.mxu0 0.0
        %1429 = vmatpush1.msra.mxu0 0.0
        %1430 = vmatprep.subr.mxu0 0.0
        %1431 = vmatpush1.msra.mxu0 0.0
        %1432 = vmatprep.subr.mxu0 0.0
        %1433 = vmatpush1.msra.mxu0 0.0
        %1434 = vmatprep.subr.mxu0 0.0
        %1435 = vmatpush1.msra.mxu0 0.0
        %1436 = vmatprep.subr.mxu0 0.0
        %1437 = vmatpush1.msra.mxu0 0.0
        %1438 = vmatprep.subr.mxu0 0.0
        %1439 = vmatpush1.msra.mxu0 0.0
        %1440 = vmatprep.subr.mxu0 0.0
        %1441 = vmatpush1.msra.mxu0 0.0
        %1442 = vmatprep.subr.mxu0 0.0
        %1443 = vmatpush1.msra.mxu0 0.0
        %1444 = vmatprep.subr.mxu0 0.0
        %1445 = vmatpush1.msra.mxu0 0.0
        %1446 = vmatprep.subr.mxu0 0.0
        %1447 = vmatpush1.msra.mxu0 0.0
        %1448 = vmatprep.subr.mxu0 0.0
        %1449 = vmatpush1.msra.mxu0 0.0
        %1450 = vmatprep.subr.mxu0 0.0
        %1451 = vmatpush1.msra.mxu0 0.0
        %1452 = vmatprep.subr.mxu0 0.0
        %1453 = vmatpush1.msra.mxu0 0.0
        %1454 = vmatprep.subr.mxu0 0.0
        %1455 = vmatpush1.msra.mxu0 0.0
        %1456 = vmatprep.subr.mxu0 0.0
        %1457 = vmatpush1.msra.mxu0 0.0
        %1458 = vmatprep.subr.mxu0 0.0
        %1459 = vmatpush1.msra.mxu0 0.0
        %1460 = vmatprep.subr.mxu0 0.0
        %1461 = vmatpush1.msra.mxu0 0.0
        %1462 = vmatprep.mubr.f32.mxu0 0.0
        %1463 = vmatmul.mubr.f32.gmra.mrb[0].mxu0 %v1396
        %v1464 = vpop.f32.mrb[0].mxu0
        %v1465 = vadd.f32 0.0, %v1464
        %v1466 = vpop.f32.mrb[0].mxu0
        %v1467 = vadd.f32 0.0, %v1466
        %1468 = vdwg.mxu0
        %v1469 = vadd.f32 %v1391, %v1465
        %v1470 = vadd.f32 %v1392, %v1467
        %v1471 = vsel %vm204, %v1303, %v1308
        %v1472 = vsel %vm205, %v1300, %v1312
        %s1473 = scalar_lea.vmem %s2, 56
        %v1474 = vld [vmem:[%s1473] sm:$0xff]
        %v1476 = vsel %vm257, %v1474, 0
        %1478 = vmatprep.subr.mxu0 %v1472
        %1479 = vmatpush1.msra.mxu0 %v1471
        %1480 = vmatprep.subr.mxu0 0.0
        %1481 = vmatpush1.msra.mxu0 0.0
        %1482 = vmatprep.subr.mxu0 0.0
        %1483 = vmatpush1.msra.mxu0 0.0
        %1484 = vmatprep.subr.mxu0 0.0
        %1485 = vmatpush1.msra.mxu0 0.0
        %1486 = vmatprep.subr.mxu0 0.0
        %1487 = vmatpush1.msra.mxu0 0.0
        %1488 = vmatprep.subr.mxu0 0.0
        %1489 = vmatpush1.msra.mxu0 0.0
        %1490 = vmatprep.subr.mxu0 0.0
        %1491 = vmatpush1.msra.mxu0 0.0
        %1492 = vmatprep.subr.mxu0 0.0
        %1493 = vmatpush1.msra.mxu0 0.0
        %1494 = vmatprep.subr.mxu0 0.0
        %1495 = vmatpush1.msra.mxu0 0.0
        %1496 = vmatprep.subr.mxu0 0.0
        %1497 = vmatpush1.msra.mxu0 0.0
        %1498 = vmatprep.subr.mxu0 0.0
        %1499 = vmatpush1.msra.mxu0 0.0
        %1500 = vmatprep.subr.mxu0 0.0
        %1501 = vmatpush1.msra.mxu0 0.0
        %1502 = vmatprep.subr.mxu0 0.0
        %1503 = vmatpush1.msra.mxu0 0.0
        %1504 = vmatprep.subr.mxu0 0.0
        %1505 = vmatpush1.msra.mxu0 0.0
        %1506 = vmatprep.subr.mxu0 0.0
        %1507 = vmatpush1.msra.mxu0 0.0
        %1508 = vmatprep.subr.mxu0 0.0
        %1509 = vmatpush1.msra.mxu0 0.0
        %1510 = vmatprep.subr.mxu0 0.0
        %1511 = vmatpush1.msra.mxu0 0.0
        %1512 = vmatprep.subr.mxu0 0.0
        %1513 = vmatpush1.msra.mxu0 0.0
        %1514 = vmatprep.subr.mxu0 0.0
        %1515 = vmatpush1.msra.mxu0 0.0
        %1516 = vmatprep.subr.mxu0 0.0
        %1517 = vmatpush1.msra.mxu0 0.0
        %1518 = vmatprep.subr.mxu0 0.0
        %1519 = vmatpush1.msra.mxu0 0.0
        %1520 = vmatprep.subr.mxu0 0.0
        %1521 = vmatpush1.msra.mxu0 0.0
        %1522 = vmatprep.subr.mxu0 0.0
        %1523 = vmatpush1.msra.mxu0 0.0
        %1524 = vmatprep.subr.mxu0 0.0
        %1525 = vmatpush1.msra.mxu0 0.0
        %1526 = vmatprep.subr.mxu0 0.0
        %1527 = vmatpush1.msra.mxu0 0.0
        %1528 = vmatprep.subr.mxu0 0.0
        %1529 = vmatpush1.msra.mxu0 0.0
        %1530 = vmatprep.subr.mxu0 0.0
        %1531 = vmatpush1.msra.mxu0 0.0
        %1532 = vmatprep.subr.mxu0 0.0
        %1533 = vmatpush1.msra.mxu0 0.0
        %1534 = vmatprep.subr.mxu0 0.0
        %1535 = vmatpush1.msra.mxu0 0.0
        %1536 = vmatprep.subr.mxu0 0.0
        %1537 = vmatpush1.msra.mxu0 0.0
        %1538 = vmatprep.subr.mxu0 0.0
        %1539 = vmatpush1.msra.mxu0 0.0
        %1540 = vmatprep.subr.mxu0 0.0
        %1541 = vmatpush1.msra.mxu0 0.0
        %1542 = vmatprep.mubr.f32.mxu0 0.0
        %1543 = vmatmul.mubr.f32.gmra.mrb[0].mxu0 %v1476
        %v1544 = vpop.f32.mrb[0].mxu0
        %v1545 = vadd.f32 0.0, %v1544
        %v1546 = vpop.f32.mrb[0].mxu0
        %v1547 = vadd.f32 0.0, %v1546
        %1548 = vdwg.mxu0
        %v1549 = vadd.f32 %v1469, %v1545
        %v1550 = vadd.f32 %v1470, %v1547
        %v1551 = vsel %vm200, %v1030, %v1035
        %v1552 = vsel %vm201, %v1027, %v1039
        %1554 = vrot.lane.b32.xlu0 %v1552, 16
        %v1555 = vpop.permute.xlu0 %1554
        %1558 = vrot.lane.b32.xlu0 %v1551, 16
        %v1559 = vpop.permute.xlu0 %1558
        %v1560 = vsel %vm237, %v1559, %v1555
        %v1563 = vsel %vm237, %v1555, %v1559
        %1564 = vrot.lane.b32.xlu0 %v1551, 112
        %v1565 = vpop.permute.xlu0 %1564
        %1566 = vrot.lane.b32.xlu0 %v1552, 112
        %v1567 = vpop.permute.xlu0 %1566
        %v1568 = vsel %vm246, %v1565, %v1567
        %v1572 = vsel %vm246, %v1567, %v1565
        %v1573 = vsel %vm202, %v1568, %v1563
        %v1574 = vsel %vm203, %v1572, %v1560
        %s1575 = scalar_lea.vmem %s2, 16
        %v1576 = vld [vmem:[%s1575] sm:$0xff]
        %v1578 = vsel %vm257, %v1576, 0
        %1580 = vmatprep.subr.mxu0 %v1574
        %1581 = vmatpush1.msra.mxu0 %v1573
        %1582 = vmatprep.subr.mxu0 0.0
        %1583 = vmatpush1.msra.mxu0 0.0
        %1584 = vmatprep.subr.mxu0 0.0
        %1585 = vmatpush1.msra.mxu0 0.0
        %1586 = vmatprep.subr.mxu0 0.0
        %1587 = vmatpush1.msra.mxu0 0.0
        %1588 = vmatprep.subr.mxu0 0.0
        %1589 = vmatpush1.msra.mxu0 0.0
        %1590 = vmatprep.subr.mxu0 0.0
        %1591 = vmatpush1.msra.mxu0 0.0
        %1592 = vmatprep.subr.mxu0 0.0
        %1593 = vmatpush1.msra.mxu0 0.0
        %1594 = vmatprep.subr.mxu0 0.0
        %1595 = vmatpush1.msra.mxu0 0.0
        %1596 = vmatprep.subr.mxu0 0.0
        %1597 = vmatpush1.msra.mxu0 0.0
        %1598 = vmatprep.subr.mxu0 0.0
        %1599 = vmatpush1.msra.mxu0 0.0
        %1600 = vmatprep.subr.mxu0 0.0
        %1601 = vmatpush1.msra.mxu0 0.0
        %1602 = vmatprep.subr.mxu0 0.0
        %1603 = vmatpush1.msra.mxu0 0.0
        %1604 = vmatprep.subr.mxu0 0.0
        %1605 = vmatpush1.msra.mxu0 0.0
        %1606 = vmatprep.subr.mxu0 0.0
        %1607 = vmatpush1.msra.mxu0 0.0
        %1608 = vmatprep.subr.mxu0 0.0
        %1609 = vmatpush1.msra.mxu0 0.0
        %1610 = vmatprep.subr.mxu0 0.0
        %1611 = vmatpush1.msra.mxu0 0.0
        %1612 = vmatprep.subr.mxu0 0.0
        %1613 = vmatpush1.msra.mxu0 0.0
        %1614 = vmatprep.subr.mxu0 0.0
        %1615 = vmatpush1.msra.mxu0 0.0
        %1616 = vmatprep.subr.mxu0 0.0
        %1617 = vmatpush1.msra.mxu0 0.0
        %1618 = vmatprep.subr.mxu0 0.0
        %1619 = vmatpush1.msra.mxu0 0.0
        %1620 = vmatprep.subr.mxu0 0.0
        %1621 = vmatpush1.msra.mxu0 0.0
        %1622 = vmatprep.subr.mxu0 0.0
        %1623 = vmatpush1.msra.mxu0 0.0
        %1624 = vmatprep.subr.mxu0 0.0
        %1625 = vmatpush1.msra.mxu0 0.0
        %1626 = vmatprep.subr.mxu0 0.0
        %1627 = vmatpush1.msra.mxu0 0.0
        %1628 = vmatprep.subr.mxu0 0.0
        %1629 = vmatpush1.msra.mxu0 0.0
        %1630 = vmatprep.subr.mxu0 0.0
        %1631 = vmatpush1.msra.mxu0 0.0
        %1632 = vmatprep.subr.mxu0 0.0
        %1633 = vmatpush1.msra.mxu0 0.0
        %1634 = vmatprep.subr.mxu0 0.0
        %1635 = vmatpush1.msra.mxu0 0.0
        %1636 = vmatprep.subr.mxu0 0.0
        %1637 = vmatpush1.msra.mxu0 0.0
        %1638 = vmatprep.subr.mxu0 0.0
        %1639 = vmatpush1.msra.mxu0 0.0
        %1640 = vmatprep.subr.mxu0 0.0
        %1641 = vmatpush1.msra.mxu0 0.0
        %1642 = vmatprep.subr.mxu0 0.0
        %1643 = vmatpush1.msra.mxu0 0.0
        %1644 = vmatprep.mubr.f32.mxu0 0.0
        %1645 = vmatmul.mubr.f32.gmra.mrb[0].mxu0 %v1578
        %v1646 = vpop.f32.mrb[0].mxu0
        %v1647 = vadd.f32 0.0, %v1646
        %v1648 = vpop.f32.mrb[0].mxu0
        %v1649 = vadd.f32 0.0, %v1648
        %1650 = vdwg.mxu0
        %v1651 = vadd.f32 %v1549, %v1647
        %v1652 = vadd.f32 %v1550, %v1649
        %s1653 = scalar_lea.vmem %s2, 40
        %v1654 = vld [vmem:[%s1653] sm:$0xff]
        %v1656 = vsel %vm257, %v1654, 0
        %1658 = vmatprep.subr.mxu0 %v1552
        %1659 = vmatpush1.msra.mxu0 %v1551
        %1660 = vmatprep.subr.mxu0 0.0
        %1661 = vmatpush1.msra.mxu0 0.0
        %1662 = vmatprep.subr.mxu0 0.0
        %1663 = vmatpush1.msra.mxu0 0.0
        %1664 = vmatprep.subr.mxu0 0.0
        %1665 = vmatpush1.msra.mxu0 0.0
        %1666 = vmatprep.subr.mxu0 0.0
        %1667 = vmatpush1.msra.mxu0 0.0
        %1668 = vmatprep.subr.mxu0 0.0
        %1669 = vmatpush1.msra.mxu0 0.0
        %1670 = vmatprep.subr.mxu0 0.0
        %1671 = vmatpush1.msra.mxu0 0.0
        %1672 = vmatprep.subr.mxu0 0.0
        %1673 = vmatpush1.msra.mxu0 0.0
        %1674 = vmatprep.subr.mxu0 0.0
        %1675 = vmatpush1.msra.mxu0 0.0
        %1676 = vmatprep.subr.mxu0 0.0
        %1677 = vmatpush1.msra.mxu0 0.0
        %1678 = vmatprep.subr.mxu0 0.0
        %1679 = vmatpush1.msra.mxu0 0.0
        %1680 = vmatprep.subr.mxu0 0.0
        %1681 = vmatpush1.msra.mxu0 0.0
        %1682 = vmatprep.subr.mxu0 0.0
        %1683 = vmatpush1.msra.mxu0 0.0
        %1684 = vmatprep.subr.mxu0 0.0
        %1685 = vmatpush1.msra.mxu0 0.0
        %1686 = vmatprep.subr.mxu0 0.0
        %1687 = vmatpush1.msra.mxu0 0.0
        %1688 = vmatprep.subr.mxu0 0.0
        %1689 = vmatpush1.msra.mxu0 0.0
        %1690 = vmatprep.subr.mxu0 0.0
        %1691 = vmatpush1.msra.mxu0 0.0
        %1692 = vmatprep.subr.mxu0 0.0
        %1693 = vmatpush1.msra.mxu0 0.0
        %1694 = vmatprep.subr.mxu0 0.0
        %1695 = vmatpush1.msra.mxu0 0.0
        %1696 = vmatprep.subr.mxu0 0.0
        %1697 = vmatpush1.msra.mxu0 0.0
        %1698 = vmatprep.subr.mxu0 0.0
        %1699 = vmatpush1.msra.mxu0 0.0
        %1700 = vmatprep.subr.mxu0 0.0
        %1701 = vmatpush1.msra.mxu0 0.0
        %1702 = vmatprep.subr.mxu0 0.0
        %1703 = vmatpush1.msra.mxu0 0.0
        %1704 = vmatprep.subr.mxu0 0.0
        %1705 = vmatpush1.msra.mxu0 0.0
        %1706 = vmatprep.subr.mxu0 0.0
        %1707 = vmatpush1.msra.mxu0 0.0
        %1708 = vmatprep.subr.mxu0 0.0
        %1709 = vmatpush1.msra.mxu0 0.0
        %1710 = vmatprep.subr.mxu0 0.0
        %1711 = vmatpush1.msra.mxu0 0.0
        %1712 = vmatprep.subr.mxu0 0.0
        %1713 = vmatpush1.msra.mxu0 0.0
        %1714 = vmatprep.subr.mxu0 0.0
        %1715 = vmatpush1.msra.mxu0 0.0
        %1716 = vmatprep.subr.mxu0 0.0
        %1717 = vmatpush1.msra.mxu0 0.0
        %1718 = vmatprep.subr.mxu0 0.0
        %1719 = vmatpush1.msra.mxu0 0.0
        %1720 = vmatprep.subr.mxu0 0.0
        %1721 = vmatpush1.msra.mxu0 0.0
        %1722 = vmatprep.mubr.f32.mxu0 0.0
        %1723 = vmatmul.mubr.f32.gmra.mrb[0].mxu0 %v1656
        %v1724 = vpop.f32.mrb[0].mxu0
        %v1725 = vadd.f32 0.0, %v1724
        %v1726 = vpop.f32.mrb[0].mxu0
        %v1727 = vadd.f32 0.0, %v1726
        %1728 = vdwg.mxu0
        %v1729 = vadd.f32 %v1651, %v1725
        %v1730 = vadd.f32 %v1652, %v1727
        %v1731 = vsel %vm204, %v1563, %v1568
        %v1732 = vsel %vm205, %v1560, %v1572
        %s1733 = scalar_lea.vmem %s2, 64
        %v1734 = vld [vmem:[%s1733] sm:$0xff]
        %v1736 = vsel %vm257, %v1734, 0
        %1738 = vmatprep.subr.mxu0 %v1732
        %1739 = vmatpush1.msra.mxu0 %v1731
        %1740 = vmatprep.subr.mxu0 0.0
        %1741 = vmatpush1.msra.mxu0 0.0
        %1742 = vmatprep.subr.mxu0 0.0
        %1743 = vmatpush1.msra.mxu0 0.0
        %1744 = vmatprep.subr.mxu0 0.0
        %1745 = vmatpush1.msra.mxu0 0.0
        %1746 = vmatprep.subr.mxu0 0.0
        %1747 = vmatpush1.msra.mxu0 0.0
        %1748 = vmatprep.subr.mxu0 0.0
        %1749 = vmatpush1.msra.mxu0 0.0
        %1750 = vmatprep.subr.mxu0 0.0
        %1751 = vmatpush1.msra.mxu0 0.0
        %1752 = vmatprep.subr.mxu0 0.0
        %1753 = vmatpush1.msra.mxu0 0.0
        %1754 = vmatprep.subr.mxu0 0.0
        %1755 = vmatpush1.msra.mxu0 0.0
        %1756 = vmatprep.subr.mxu0 0.0
        %1757 = vmatpush1.msra.mxu0 0.0
        %1758 = vmatprep.subr.mxu0 0.0
        %1759 = vmatpush1.msra.mxu0 0.0
        %1760 = vmatprep.subr.mxu0 0.0
        %1761 = vmatpush1.msra.mxu0 0.0
        %1762 = vmatprep.subr.mxu0 0.0
        %1763 = vmatpush1.msra.mxu0 0.0
        %1764 = vmatprep.subr.mxu0 0.0
        %1765 = vmatpush1.msra.mxu0 0.0
        %1766 = vmatprep.subr.mxu0 0.0
        %1767 = vmatpush1.msra.mxu0 0.0
        %1768 = vmatprep.subr.mxu0 0.0
        %1769 = vmatpush1.msra.mxu0 0.0
        %1770 = vmatprep.subr.mxu0 0.0
        %1771 = vmatpush1.msra.mxu0 0.0
        %1772 = vmatprep.subr.mxu0 0.0
        %1773 = vmatpush1.msra.mxu0 0.0
        %1774 = vmatprep.subr.mxu0 0.0
        %1775 = vmatpush1.msra.mxu0 0.0
        %1776 = vmatprep.subr.mxu0 0.0
        %1777 = vmatpush1.msra.mxu0 0.0
        %1778 = vmatprep.subr.mxu0 0.0
        %1779 = vmatpush1.msra.mxu0 0.0
        %1780 = vmatprep.subr.mxu0 0.0
        %1781 = vmatpush1.msra.mxu0 0.0
        %1782 = vmatprep.subr.mxu0 0.0
        %1783 = vmatpush1.msra.mxu0 0.0
        %1784 = vmatprep.subr.mxu0 0.0
        %1785 = vmatpush1.msra.mxu0 0.0
        %1786 = vmatprep.subr.mxu0 0.0
        %1787 = vmatpush1.msra.mxu0 0.0
        %1788 = vmatprep.subr.mxu0 0.0
        %1789 = vmatpush1.msra.mxu0 0.0
        %1790 = vmatprep.subr.mxu0 0.0
        %1791 = vmatpush1.msra.mxu0 0.0
        %1792 = vmatprep.subr.mxu0 0.0
        %1793 = vmatpush1.msra.mxu0 0.0
        %1794 = vmatprep.subr.mxu0 0.0
        %1795 = vmatpush1.msra.mxu0 0.0
        %1796 = vmatprep.subr.mxu0 0.0
        %1797 = vmatpush1.msra.mxu0 0.0
        %1798 = vmatprep.subr.mxu0 0.0
        %1799 = vmatpush1.msra.mxu0 0.0
        %1800 = vmatprep.subr.mxu0 0.0
        %1801 = vmatpush1.msra.mxu0 0.0
        %1802 = vmatprep.mubr.f32.mxu0 0.0
        %1803 = vmatmul.mubr.f32.gmra.mrb[0].mxu0 %v1736
        %v1804 = vpop.f32.mrb[0].mxu0
        %v1805 = vadd.f32 0.0, %v1804
        %v1806 = vpop.f32.mrb[0].mxu0
        %v1807 = vadd.f32 0.0, %v1806
        %1808 = vdwg.mxu0
        %v1809 = vadd.f32 %v1729, %v1805
        %v1810 = vadd.f32 %v1730, %v1807
        %v1811 = vadd.f32 %v1809, %v1810
        %1812 = vadd.xlane.f32.xlu0 %v1811
        %v1813 = vpop.xlane.xlu0 %1812
        %v1814 = vmul.f32 %v1813, 0.00390625
        %v1815 = vsub.f32 %v1809, %v1814
        %v1816 = vsub.f32 %v1810, %v1814
        %v1817 = vmul.f32 %v1815, %v1815
        %v1818 = vmul.f32 %v1816, %v1816
        %v1819 = vadd.f32 %v1817, %v1818
        %1820 = vadd.xlane.f32.xlu0 %v1819
        %v1821 = vpop.xlane.xlu0 %1820
        %v1822 = vmul.f32 %v1821, 0.00390625
        %v1823 = vadd.f32 %v1822, 1e-05
        %v1824 = vrsqrt.pop %v1823
        %v1825 = vmul.f32 %v1815, %v1824
        %v1826 = vmul.f32 %v1816, %v1824
        %v1827 = vadd.f32 %v169, %v1825
        %v1828 = vadd.f32 %v170, %v1826
        %1829 = vst [vmem:[%s163] sm:$0xff] %v1827
        %1830 = vst [vmem:[%s163 + $0x8] sm:$0xff] %v1828
        %s1831 = sand.u32 %s93, 1
        %s1832 = scalar_lea.sflag [#allocation3], %s1831
        %s1833 = sand.u32 %s93, 1
        %s1834 = smul.addr %s1833, 16
        %s1835 = scalar_lea.vmem [#allocation2], %s1834
        // Predicated region
        $region33: #{tpu_custom_call.1} parent=31 // pred_check
          %p1836 = pneg %p103
        $region34: #{tpu_custom_call.1} parent=31 // pred_check_branch
          %1838 = sbr.rel (%p1836) target = $region36
        $region35: #{tpu_custom_call.1} parent=31 // pred_region
          %s1840 = ssub.s32 256, 256
          %1841 = vsyncadd %s1832, %s1840
          %s1842 = smul.addr %s17, 2
          %s1843 = smul.addr %s1842, 128
          %s1844 = scalar_lea.hbm %s3, %s1843
          %s1846 = sshll.u32 %s1835, 4
          %s1847 = int_to_ptr.vmem [resolvable:$true] %s1846
          %1849 = dma.vmem_to_hbm [thread:$0]  %s1847, 256, %s1844, %s1832
        $region36: #{tpu_custom_call.1} parent=31 // pred_fallthru
          _
      $region32: #{tpu_custom_call.1} parent=5 // pred_fallthru
        _
      %p1850 = scmp.le.s32.totalorder 2, %s12
      // Predicated region
      $region37: #{tpu_custom_call.1} parent=5 // pred_check
        %p1851 = pneg %p1850
      $region38: #{tpu_custom_call.1} parent=5 // pred_check_branch
        %1853 = sbr.rel (%p1851) target = $region40
      $region39: #{tpu_custom_call.1} parent=5 // pred_region
        %s1854 = ssub.s32 %s12, 2
        // Predicated region
        $region41: #{tpu_custom_call.1} parent=39 // pred_check
          %p1855 = pneg %p109
        $region42: #{tpu_custom_call.1} parent=39 // pred_check_branch
          %1857 = sbr.rel (%p1855) target = $region44
        $region43: #{tpu_custom_call.1} parent=39 // pred_region
          %s1858 = sand.u32 %s94, 1
          %s1859 = scalar_lea.sflag [#allocation3], %s1858
          %s1860 = sand.u32 %s94, 1
          %s1861 = smul.addr %s1860, 16
          %s1862 = scalar_lea.vmem [#allocation2], %s1861
          %1863 = dma.done %s1859, 256
        $region44: #{tpu_custom_call.1} parent=39 // pred_fallthru
          _
      $region40: #{tpu_custom_call.1} parent=5 // pred_fallthru
        _
    $region6: #{tpu_custom_call.1} parent=1 // loop_footer
      %s16 = sadd.s32 1, %s12
    $region7: #{tpu_custom_call.1} parent=1 // loop_footer_branch
      %11 = sbr.rel target = $region3
    $region8: #{tpu_custom_call.1} parent=1 // loop_exit
      _
    %1864 = vsyncpa [#allocation3], 1
    %s1865 = scalar_lea.sflag [#allocation3], 1
    %1866 = vsyncpa %s1865, 1

</llo_original>
